<compile_context>
chip_gen: v7x
topology: tpu7x:2x2x1
jax: 0.10.0
libtpu: 0.0.40
codegen_flags: <defaults>
</compile_context>

<pallas_src>
import functools
import math

import jax
import jax.numpy as jnp
from jax.experimental import pallas as pl
from jax.experimental.pallas import tpu as pltpu

EPS = 1e-5                         # nn.InstanceNorm2d default
INV_SQRT2 = 1.0 / math.sqrt(2.0)
_TANH_C0 = math.sqrt(2.0 / math.pi)


def convblock_kernel(x_ref, w1t_ref, w2_ref, b2_ref, mask_ref, out_ref, *,
                     tap_offsets, acc_w, inv_count, gelu_dtype, approx_gelu):
    # x_ref:    (1, Cin, FLAT_PAD) bf16  zero-padded image, spatial flat on lanes
    # w1t_ref:  (k*k, Cout, Cin)   bf16  conv taps w1[:, :, i, j]
    # w2_ref:   (Cout, Cout)       bf16  1x1 conv weight
    # b2_ref:   (Cout, 1)          f32
    # mask_ref: (1, ACC_W)         f32   1.0 at the OH*OW valid output lanes
    # out_ref:  (1, Cout, ACC_W)
    cout = out_ref.shape[1]

    # Convolution as k*k shifted matmuls (bf16 inputs, f32 MXU accumulation).
    # b1 is omitted on purpose: InstanceNorm's mean subtraction cancels it.
    y = jnp.zeros((cout, acc_w), jnp.float32)
    for t, off in enumerate(tap_offsets):          # static unroll over k*k taps
        y = y + jnp.dot(w1t_ref[t], x_ref[0, :, off:off + acc_w],
                        preferred_element_type=jnp.float32)

    # InstanceNorm2d(affine=False): per-channel stats over the VALID spatial
    # lanes only (mask read/hoisted once), biased variance, eps=1e-5, f32.
    mask = mask_ref[...]                           # (1, ACC_W)
    mean = jnp.sum(y * mask, axis=-1, keepdims=True) * inv_count
    c = (y - mean) * mask                          # invalid lanes -> 0
    var = jnp.sum(c * c, axis=-1, keepdims=True) * inv_count
    yn = (c * jax.lax.rsqrt(var + EPS)).astype(gelu_dtype)

    # GELU.  Exact erf (PyTorch nn.GELU default) by default; tanh approximation
    # (routes the transcendental through the EUP) behind a flag since it
    # changes results at the ~1e-3 level.
    if approx_gelu:
        g = 0.5 * yn * (1.0 + jnp.tanh(_TANH_C0 * (yn + 0.044715 * yn * yn * yn)))
    else:
        g = 0.5 * yn * (1.0 + jax.lax.erf(yn * INV_SQRT2))

    # Dropout: identity in eval mode (deterministic forward).
    # TODO(synk): training-mode dropout (pltpu.prng_seed + prng_random_bits).

    # Final 1x1 conv + bias (bias added once; garbage lanes are dropped in the
    # wrapper extraction).
    o = jnp.dot(w2_ref[...], g.astype(w2_ref.dtype),
                preferred_element_type=jnp.float32) + b2_ref[...]
    out_ref[0] = o.astype(out_ref.dtype)


def _round_up(x, m):
    return (x + m - 1) // m * m


def conv_block_forward(x, w1, b1, w2, b2, *, kernel_size, stride, padding,
                       out_dtype=jnp.float32, gelu_in_bf16=False,
                       approx_gelu=False):
    """x: (N, Cin, H, W) NCHW f32; returns (N, Cout, OH, OW) NCHW `out_dtype`."""
    N, Cin, H, W = x.shape
    Cout = w1.shape[0]
    k = kernel_size
    s = stride

    Hp, Wp = H + 2 * padding, W + 2 * padding
    OH = (Hp - k) // s + 1
    OW = (Wp - k) // s + 1
    n_valid = OH * OW

    # Working spatial width on the lane axis: multiple of 128 so every store is
    # an unmasked lane-dense vst (biggest measured store-side lever).
    last_q = (OH - 1) * s * Wp + (OW - 1) * s        # last valid flat position
    acc_w_min = OH * Wp if s == 1 else last_q + 1
    ACC_W = _round_up(max(acc_w_min, 128), 128)
    max_off = (k - 1) * Wp + (k - 1)                 # largest tap offset
    FLAT_PAD = _round_up(max(Hp * Wp, max_off + ACC_W), 128)

    # Zero-padded input, flattened spatially, bf16 (halves the input DMA).
    xp = jnp.pad(x, ((0, 0), (0, 0), (padding, padding), (padding, padding)))
    x_flat = jnp.pad(xp.reshape(N, Cin, Hp * Wp),
                     ((0, 0), (0, 0), (0, FLAT_PAD - Hp * Wp))).astype(jnp.bfloat16)

    # Per-tap conv weights (k*k, Cout, Cin) and their flat lane offsets.
    w1_taps = jnp.transpose(w1, (2, 3, 0, 1)).reshape(k * k, Cout, Cin)
    w1_taps = w1_taps.astype(jnp.bfloat16)
    tap_offsets = tuple(i * Wp + j for i in range(k) for j in range(k))

    w2_mat = w2.reshape(Cout, Cout).astype(jnp.bfloat16)
    b2_col = b2.reshape(Cout, 1).astype(jnp.float32)
    del b1   # cancelled exactly by InstanceNorm's mean subtraction

    # {0,1} mask marking the valid output lanes q = (oh*s)*Wp + ow*s.
    q = ((jnp.arange(OH) * s)[:, None] * Wp
         + (jnp.arange(OW) * s)[None, :]).reshape(-1)
    mask = jnp.zeros((ACC_W,), jnp.float32).at[q].set(1.0).reshape(1, ACC_W)

    # Device-aware knobs: v7x has 64 MiB VMEM per TensorCore (v5e/v6e: 128 MiB).
    kind = jax.devices()[0].device_kind.lower()
    vmem_cap = (48 << 20) if "v7" in kind else (100 << 20)
    out_isz = jnp.dtype(out_dtype).itemsize
    per_step = 2 * (Cin * FLAT_PAD * 2 + Cout * ACC_W * out_isz)   # dbl-buffered
    vmem_limit = int(min(vmem_cap, max(32 << 20, 4 * per_step)))

    kk = k * k
    flops = N * (kk * 2 * Cout * Cin * ACC_W + 2 * Cout * Cout * ACC_W)
    bytes_accessed = (x_flat.size * 2 + w1_taps.size * 2 + w2_mat.size * 2
                      + b2_col.size * 4 + mask.size * 4
                      + N * Cout * ACC_W * out_isz)

    kernel = functools.partial(
        convblock_kernel,
        tap_offsets=tap_offsets, acc_w=ACC_W, inv_count=1.0 / n_valid,
        # bf16 GELU is a v6e/v7x-only win (bf16 VALU/EUP); kept off by default
        # because v5e has no bf16 VPU and exact-erf bf16 lowering is unverified.
        gelu_dtype=jnp.bfloat16 if gelu_in_bf16 else jnp.float32,
        approx_gelu=approx_gelu)

    out = pl.pallas_call(
        kernel,
        out_shape=jax.ShapeDtypeStruct((N, Cout, ACC_W), out_dtype),
        grid_spec=pltpu.PrefetchScalarGridSpec(
            num_scalar_prefetch=0,
            grid=(N,),          # one image per step; "parallel" -> v7x's two
                                # TensorCores each take a shard of the batch.
            in_specs=[
                pl.BlockSpec((1, Cin, FLAT_PAD), lambda n: (n, 0, 0)),
                pl.BlockSpec((kk, Cout, Cin), lambda n: (0, 0, 0)),
                pl.BlockSpec((Cout, Cout), lambda n: (0, 0)),
                pl.BlockSpec((Cout, 1), lambda n: (0, 0)),
                pl.BlockSpec((1, ACC_W), lambda n: (0, 0)),
            ],
            out_specs=pl.BlockSpec((1, Cout, ACC_W), lambda n: (n, 0, 0)),
        ),
        compiler_params=pltpu.CompilerParams(
            dimension_semantics=("parallel",),
            vmem_limit_bytes=vmem_limit),
        cost_estimate=pl.CostEstimate(
            flops=flops,
            transcendentals=N * Cout * ACC_W,
            bytes_accessed=bytes_accessed),
    )(x_flat, w1_taps, w2_mat, b2_col, mask)

    # Extract the OH*OW valid lanes.  stride==1: pure reshape + slice.
    if s == 1:
        out = out[:, :, :OH * Wp].reshape(N, Cout, OH, Wp)[:, :, :, :OW]
    else:
        out = jnp.take(out, q, axis=-1).reshape(N, Cout, OH, OW)
    return out
    # TODO(synk): for very large OH*OW, tile the lane axis with a two-pass
    # (sum/sumsq) InstanceNorm over an 'arbitrary' grid axis + VMEM scratch,
    # and pack several small images per grid step to amortize step overhead.


def conv_block_reference(x, w1, b1, w2, b2, *, kernel_size, stride, padding):
    """Pure-JAX f32 reference (lax.conv) of the original module."""
    y = jax.lax.conv_general_dilated(
        x, w1, window_strides=(stride, stride),
        padding=[(padding, padding), (padding, padding)],
        dimension_numbers=("NCHW", "OIHW", "NCHW"))
    y = y + b1[None, :, None, None]
    mean = jnp.mean(y, axis=(2, 3), keepdims=True)
    var = jnp.mean((y - mean) ** 2, axis=(2, 3), keepdims=True)
    yn = (y - mean) * jax.lax.rsqrt(var + EPS)
    g = 0.5 * yn * (1.0 + jax.lax.erf(yn * INV_SQRT2))
    o = jax.lax.conv_general_dilated(
        g, w2, window_strides=(1, 1), padding=[(0, 0), (0, 0)],
        dimension_numbers=("NCHW", "OIHW", "NCHW"))
    return o + b2[None, :, None, None]


if __name__ == "__main__":

    def run_case(seed, n, cin, cout, h, w, k, stride, padding):
        key = jax.random.PRNGKey(seed)
        kx, k1, k2, k3, k4 = jax.random.split(key, 5)
        # bf16-representable test values: the in-kernel bf16 MXU cast of x/w is
        # then lossless, so the comparison isolates kernel correctness.
        q16 = lambda a: a.astype(jnp.bfloat16).astype(jnp.float32)
        fan1 = cin * k * k
        x = q16(jax.random.normal(kx, (n, cin, h, w), jnp.float32))
        w1 = q16(jax.random.uniform(k1, (cout, cin, k, k), jnp.float32,
                                    -1.0 / math.sqrt(fan1), 1.0 / math.sqrt(fan1)))
        b1 = jax.random.uniform(k2, (cout,), jnp.float32,
                                -1.0 / math.sqrt(fan1), 1.0 / math.sqrt(fan1))
        w2 = q16(jax.random.uniform(k3, (cout, cout, 1, 1), jnp.float32,
                                    -1.0 / math.sqrt(cout), 1.0 / math.sqrt(cout)))
        b2 = jax.random.uniform(k4, (cout,), jnp.float32,
                                -1.0 / math.sqrt(cout), 1.0 / math.sqrt(cout))

        fwd = jax.jit(functools.partial(conv_block_forward, kernel_size=k,
                                        stride=stride, padding=padding))
        out = jax.block_until_ready(fwd(x, w1, b1, w2, b2))
        ref = conv_block_reference(x, w1, b1, w2, b2, kernel_size=k,
                                   stride=stride, padding=padding)
        assert out.shape == ref.shape, (out.shape, ref.shape)
        err = float(jnp.max(jnp.abs(out - ref)))
        assert err < 2e-2, f"max abs err {err}"

    # ConvBlock(in_channels=4, out_channels=8, kernel_size=3, stride=1,
    #           padding=1, drop_rate=0.1) -- the module's nominal config.
    run_case(0, n=2, cin=4, cout=8, h=16, w=16, k=3, stride=1, padding=1)
    # Strided, odd-sized variant exercising the masked-lane / gather path.
    run_case(1, n=2, cin=3, cout=16, h=15, w=15, k=3, stride=2, padding=1)

    print("KERNEL_OK")
</pallas_src>

<mosaic_0001>
module attributes {stable_mosaic.version = 11 : i64} {
  func.func @convblock_kernel(%arg0: i32, %arg1: memref<1x4x512xbf16, #tpu.memory_space<vmem>>, %arg2: memref<9x8x4xbf16, #tpu.memory_space<vmem>>, %arg3: memref<8x8xbf16, #tpu.memory_space<vmem>>, %arg4: memref<8x1xf32, #tpu.memory_space<vmem>>, %arg5: memref<1x384xf32, #tpu.memory_space<vmem>>, %arg6: memref<1x8x384xf32, #tpu.memory_space<vmem>>) attributes {dimension_semantics = [#tpu.dimension_semantics<parallel>], iteration_bounds = array<i64: 2>, scalar_prefetch = 0 : i64, scratch_operands = 0 : i64, tpu.core_type = #tpu.core_type<tc>, window_params = [{transform_indices = @transform_0, window_bounds = array<i64: 1, 4, 512>}, {pipeline_mode = #tpu.pipeline_mode<synchronous>, transform_indices = @transform_1, window_bounds = array<i64: 9, 8, 4>}, {pipeline_mode = #tpu.pipeline_mode<synchronous>, transform_indices = @transform_2, window_bounds = array<i64: 8, 8>}, {pipeline_mode = #tpu.pipeline_mode<synchronous>, transform_indices = @transform_3, window_bounds = array<i64: 8, 1>}, {pipeline_mode = #tpu.pipeline_mode<synchronous>, transform_indices = @transform_4, window_bounds = array<i64: 1, 384>}, {transform_indices = @transform_5, window_bounds = array<i64: 1, 8, 384>}]} {
    %cst = arith.constant 0.000000e+00 : f32
    %0 = vector.broadcast %cst : f32 to vector<8x384xf32>
    %c0 = arith.constant 0 : index
    %c0_0 = arith.constant 0 : index
    %c0_1 = arith.constant 0 : index
    %1 = vector.load %arg2[%c0, %c0_0, %c0_1] : memref<9x8x4xbf16, #tpu.memory_space<vmem>>, vector<1x8x4xbf16>
    %2 = vector.shape_cast %1 : vector<1x8x4xbf16> to vector<8x4xbf16>
    %c0_2 = arith.constant 0 : index
    %c0_3 = arith.constant 0 : index
    %c0_4 = arith.constant 0 : index
    %3 = vector.load %arg1[%c0_2, %c0_3, %c0_4] : memref<1x4x512xbf16, #tpu.memory_space<vmem>>, vector<1x4x384xbf16>
    %4 = vector.shape_cast %3 : vector<1x4x384xbf16> to vector<4x384xbf16>
    %cst_5 = arith.constant dense<0.000000e+00> : vector<8x384xf32>
    %5 = tpu.matmul %2, %4, %cst_5 {dimension_numbers = #tpu.dot_dimension_numbers<[1], [0], [0], [1], [0, 0, 1, 1], [], []>} : vector<8x4xbf16>, vector<4x384xbf16>, vector<8x384xf32> -> vector<8x384xf32>
    %6 = arith.addf %0, %5 : vector<8x384xf32>
    %c1 = arith.constant 1 : index
    %c0_6 = arith.constant 0 : index
    %c0_7 = arith.constant 0 : index
    %7 = vector.load %arg2[%c1, %c0_6, %c0_7] : memref<9x8x4xbf16, #tpu.memory_space<vmem>>, vector<1x8x4xbf16>
    %8 = vector.shape_cast %7 : vector<1x8x4xbf16> to vector<8x4xbf16>
    %c0_8 = arith.constant 0 : index
    %c0_9 = arith.constant 0 : index
    %c1_10 = arith.constant 1 : index
    %9 = vector.load %arg1[%c0_8, %c0_9, %c1_10] : memref<1x4x512xbf16, #tpu.memory_space<vmem>>, vector<1x4x384xbf16>
    %10 = vector.shape_cast %9 : vector<1x4x384xbf16> to vector<4x384xbf16>
    %cst_11 = arith.constant dense<0.000000e+00> : vector<8x384xf32>
    %11 = tpu.matmul %8, %10, %cst_11 {dimension_numbers = #tpu.dot_dimension_numbers<[1], [0], [0], [1], [0, 0, 1, 1], [], []>} : vector<8x4xbf16>, vector<4x384xbf16>, vector<8x384xf32> -> vector<8x384xf32>
    %12 = arith.addf %6, %11 : vector<8x384xf32>
    %c2 = arith.constant 2 : index
    %c0_12 = arith.constant 0 : index
    %c0_13 = arith.constant 0 : index
    %13 = vector.load %arg2[%c2, %c0_12, %c0_13] : memref<9x8x4xbf16, #tpu.memory_space<vmem>>, vector<1x8x4xbf16>
    %14 = vector.shape_cast %13 : vector<1x8x4xbf16> to vector<8x4xbf16>
    %c0_14 = arith.constant 0 : index
    %c0_15 = arith.constant 0 : index
    %c2_16 = arith.constant 2 : index
    %15 = vector.load %arg1[%c0_14, %c0_15, %c2_16] : memref<1x4x512xbf16, #tpu.memory_space<vmem>>, vector<1x4x384xbf16>
    %16 = vector.shape_cast %15 : vector<1x4x384xbf16> to vector<4x384xbf16>
    %cst_17 = arith.constant dense<0.000000e+00> : vector<8x384xf32>
    %17 = tpu.matmul %14, %16, %cst_17 {dimension_numbers = #tpu.dot_dimension_numbers<[1], [0], [0], [1], [0, 0, 1, 1], [], []>} : vector<8x4xbf16>, vector<4x384xbf16>, vector<8x384xf32> -> vector<8x384xf32>
    %18 = arith.addf %12, %17 : vector<8x384xf32>
    %c3 = arith.constant 3 : index
    %c0_18 = arith.constant 0 : index
    %c0_19 = arith.constant 0 : index
    %19 = vector.load %arg2[%c3, %c0_18, %c0_19] : memref<9x8x4xbf16, #tpu.memory_space<vmem>>, vector<1x8x4xbf16>
    %20 = vector.shape_cast %19 : vector<1x8x4xbf16> to vector<8x4xbf16>
    %c0_20 = arith.constant 0 : index
    %c0_21 = arith.constant 0 : index
    %c18 = arith.constant 18 : index
    %21 = vector.load %arg1[%c0_20, %c0_21, %c18] : memref<1x4x512xbf16, #tpu.memory_space<vmem>>, vector<1x4x384xbf16>
    %22 = vector.shape_cast %21 : vector<1x4x384xbf16> to vector<4x384xbf16>
    %cst_22 = arith.constant dense<0.000000e+00> : vector<8x384xf32>
    %23 = tpu.matmul %20, %22, %cst_22 {dimension_numbers = #tpu.dot_dimension_numbers<[1], [0], [0], [1], [0, 0, 1, 1], [], []>} : vector<8x4xbf16>, vector<4x384xbf16>, vector<8x384xf32> -> vector<8x384xf32>
    %24 = arith.addf %18, %23 : vector<8x384xf32>
    %c4 = arith.constant 4 : index
    %c0_23 = arith.constant 0 : index
    %c0_24 = arith.constant 0 : index
    %25 = vector.load %arg2[%c4, %c0_23, %c0_24] : memref<9x8x4xbf16, #tpu.memory_space<vmem>>, vector<1x8x4xbf16>
    %26 = vector.shape_cast %25 : vector<1x8x4xbf16> to vector<8x4xbf16>
    %c0_25 = arith.constant 0 : index
    %c0_26 = arith.constant 0 : index
    %c19 = arith.constant 19 : index
    %27 = vector.load %arg1[%c0_25, %c0_26, %c19] : memref<1x4x512xbf16, #tpu.memory_space<vmem>>, vector<1x4x384xbf16>
    %28 = vector.shape_cast %27 : vector<1x4x384xbf16> to vector<4x384xbf16>
    %cst_27 = arith.constant dense<0.000000e+00> : vector<8x384xf32>
    %29 = tpu.matmul %26, %28, %cst_27 {dimension_numbers = #tpu.dot_dimension_numbers<[1], [0], [0], [1], [0, 0, 1, 1], [], []>} : vector<8x4xbf16>, vector<4x384xbf16>, vector<8x384xf32> -> vector<8x384xf32>
    %30 = arith.addf %24, %29 : vector<8x384xf32>
    %c5 = arith.constant 5 : index
    %c0_28 = arith.constant 0 : index
    %c0_29 = arith.constant 0 : index
    %31 = vector.load %arg2[%c5, %c0_28, %c0_29] : memref<9x8x4xbf16, #tpu.memory_space<vmem>>, vector<1x8x4xbf16>
    %32 = vector.shape_cast %31 : vector<1x8x4xbf16> to vector<8x4xbf16>
    %c0_30 = arith.constant 0 : index
    %c0_31 = arith.constant 0 : index
    %c20 = arith.constant 20 : index
    %33 = vector.load %arg1[%c0_30, %c0_31, %c20] : memref<1x4x512xbf16, #tpu.memory_space<vmem>>, vector<1x4x384xbf16>
    %34 = vector.shape_cast %33 : vector<1x4x384xbf16> to vector<4x384xbf16>
    %cst_32 = arith.constant dense<0.000000e+00> : vector<8x384xf32>
    %35 = tpu.matmul %32, %34, %cst_32 {dimension_numbers = #tpu.dot_dimension_numbers<[1], [0], [0], [1], [0, 0, 1, 1], [], []>} : vector<8x4xbf16>, vector<4x384xbf16>, vector<8x384xf32> -> vector<8x384xf32>
    %36 = arith.addf %30, %35 : vector<8x384xf32>
    %c6 = arith.constant 6 : index
    %c0_33 = arith.constant 0 : index
    %c0_34 = arith.constant 0 : index
    %37 = vector.load %arg2[%c6, %c0_33, %c0_34] : memref<9x8x4xbf16, #tpu.memory_space<vmem>>, vector<1x8x4xbf16>
    %38 = vector.shape_cast %37 : vector<1x8x4xbf16> to vector<8x4xbf16>
    %c0_35 = arith.constant 0 : index
    %c0_36 = arith.constant 0 : index
    %c36 = arith.constant 36 : index
    %39 = vector.load %arg1[%c0_35, %c0_36, %c36] : memref<1x4x512xbf16, #tpu.memory_space<vmem>>, vector<1x4x384xbf16>
    %40 = vector.shape_cast %39 : vector<1x4x384xbf16> to vector<4x384xbf16>
    %cst_37 = arith.constant dense<0.000000e+00> : vector<8x384xf32>
    %41 = tpu.matmul %38, %40, %cst_37 {dimension_numbers = #tpu.dot_dimension_numbers<[1], [0], [0], [1], [0, 0, 1, 1], [], []>} : vector<8x4xbf16>, vector<4x384xbf16>, vector<8x384xf32> -> vector<8x384xf32>
    %42 = arith.addf %36, %41 : vector<8x384xf32>
    %c7 = arith.constant 7 : index
    %c0_38 = arith.constant 0 : index
    %c0_39 = arith.constant 0 : index
    %43 = vector.load %arg2[%c7, %c0_38, %c0_39] : memref<9x8x4xbf16, #tpu.memory_space<vmem>>, vector<1x8x4xbf16>
    %44 = vector.shape_cast %43 : vector<1x8x4xbf16> to vector<8x4xbf16>
    %c0_40 = arith.constant 0 : index
    %c0_41 = arith.constant 0 : index
    %c37 = arith.constant 37 : index
    %45 = vector.load %arg1[%c0_40, %c0_41, %c37] : memref<1x4x512xbf16, #tpu.memory_space<vmem>>, vector<1x4x384xbf16>
    %46 = vector.shape_cast %45 : vector<1x4x384xbf16> to vector<4x384xbf16>
    %cst_42 = arith.constant dense<0.000000e+00> : vector<8x384xf32>
    %47 = tpu.matmul %44, %46, %cst_42 {dimension_numbers = #tpu.dot_dimension_numbers<[1], [0], [0], [1], [0, 0, 1, 1], [], []>} : vector<8x4xbf16>, vector<4x384xbf16>, vector<8x384xf32> -> vector<8x384xf32>
    %48 = arith.addf %42, %47 : vector<8x384xf32>
    %c8 = arith.constant 8 : index
    %c0_43 = arith.constant 0 : index
    %c0_44 = arith.constant 0 : index
    %49 = vector.load %arg2[%c8, %c0_43, %c0_44] : memref<9x8x4xbf16, #tpu.memory_space<vmem>>, vector<1x8x4xbf16>
    %50 = vector.shape_cast %49 : vector<1x8x4xbf16> to vector<8x4xbf16>
    %c0_45 = arith.constant 0 : index
    %c0_46 = arith.constant 0 : index
    %c38 = arith.constant 38 : index
    %51 = vector.load %arg1[%c0_45, %c0_46, %c38] : memref<1x4x512xbf16, #tpu.memory_space<vmem>>, vector<1x4x384xbf16>
    %52 = vector.shape_cast %51 : vector<1x4x384xbf16> to vector<4x384xbf16>
    %cst_47 = arith.constant dense<0.000000e+00> : vector<8x384xf32>
    %53 = tpu.matmul %50, %52, %cst_47 {dimension_numbers = #tpu.dot_dimension_numbers<[1], [0], [0], [1], [0, 0, 1, 1], [], []>} : vector<8x4xbf16>, vector<4x384xbf16>, vector<8x384xf32> -> vector<8x384xf32>
    %54 = arith.addf %48, %53 : vector<8x384xf32>
    %c0_48 = arith.constant 0 : index
    %c0_49 = arith.constant 0 : index
    %55 = vector.load %arg5[%c0_48, %c0_49] : memref<1x384xf32, #tpu.memory_space<vmem>>, vector<1x384xf32>
    %56 = vector.broadcast %55 : vector<1x384xf32> to vector<8x384xf32>
    %57 = arith.mulf %54, %56 : vector<8x384xf32>
    %cst_50 = arith.constant dense<0.000000e+00> : vector<8xf32>
    %58 = vector.multi_reduction <add>, %57, %cst_50 [1] : vector<8x384xf32> to vector<8xf32>
    %59 = vector.shape_cast %58 : vector<8xf32> to vector<8x1xf32>
    %cst_51 = arith.constant 3.906250e-03 : f32
    %60 = vector.broadcast %cst_51 : f32 to vector<8x1xf32>
    %61 = arith.mulf %59, %60 : vector<8x1xf32>
    %62 = vector.broadcast %61 : vector<8x1xf32> to vector<8x384xf32>
    %63 = arith.subf %54, %62 : vector<8x384xf32>
    %64 = vector.broadcast %55 : vector<1x384xf32> to vector<8x384xf32>
    %65 = arith.mulf %63, %64 : vector<8x384xf32>
    %66 = arith.mulf %65, %65 : vector<8x384xf32>
    %cst_52 = arith.constant dense<0.000000e+00> : vector<8xf32>
    %67 = vector.multi_reduction <add>, %66, %cst_52 [1] : vector<8x384xf32> to vector<8xf32>
    %68 = vector.shape_cast %67 : vector<8xf32> to vector<8x1xf32>
    %cst_53 = arith.constant 3.906250e-03 : f32
    %69 = vector.broadcast %cst_53 : f32 to vector<8x1xf32>
    %70 = arith.mulf %68, %69 : vector<8x1xf32>
    %cst_54 = arith.constant 9.99999974E-6 : f32
    %71 = vector.broadcast %cst_54 : f32 to vector<8x1xf32>
    %72 = arith.addf %70, %71 : vector<8x1xf32>
    %73 = math.rsqrt %72 : vector<8x1xf32>
    %74 = vector.broadcast %73 : vector<8x1xf32> to vector<8x384xf32>
    %75 = arith.mulf %65, %74 : vector<8x384xf32>
    %cst_55 = arith.constant 5.000000e-01 : f32
    %76 = vector.broadcast %cst_55 : f32 to vector<8x384xf32>
    %77 = arith.mulf %76, %75 : vector<8x384xf32>
    %cst_56 = arith.constant 0.707106769 : f32
    %78 = vector.broadcast %cst_56 : f32 to vector<8x384xf32>
    %79 = arith.mulf %75, %78 : vector<8x384xf32>
    %80 = math.erf %79 : vector<8x384xf32>
    %cst_57 = arith.constant 1.000000e+00 : f32
    %81 = vector.broadcast %cst_57 : f32 to vector<8x384xf32>
    %82 = arith.addf %81, %80 : vector<8x384xf32>
    %83 = arith.mulf %77, %82 : vector<8x384xf32>
    %c0_58 = arith.constant 0 : index
    %c0_59 = arith.constant 0 : index
    %84 = vector.load %arg3[%c0_58, %c0_59] : memref<8x8xbf16, #tpu.memory_space<vmem>>, vector<8x8xbf16>
    %85 = arith.truncf %83 : vector<8x384xf32> to vector<8x384xbf16>
    %cst_60 = arith.constant dense<0.000000e+00> : vector<8x384xf32>
    %86 = tpu.matmul %84, %85, %cst_60 {dimension_numbers = #tpu.dot_dimension_numbers<[1], [0], [0], [1], [0, 0, 1, 1], [], []>} : vector<8x8xbf16>, vector<8x384xbf16>, vector<8x384xf32> -> vector<8x384xf32>
    %c0_61 = arith.constant 0 : index
    %c0_62 = arith.constant 0 : index
    %87 = vector.load %arg4[%c0_61, %c0_62] : memref<8x1xf32, #tpu.memory_space<vmem>>, vector<8x1xf32>
    %88 = vector.broadcast %87 : vector<8x1xf32> to vector<8x384xf32>
    %89 = arith.addf %86, %88 : vector<8x384xf32>
    %c0_63 = arith.constant 0 : index
    %c0_64 = arith.constant 0 : index
    %c0_65 = arith.constant 0 : index
    %90 = vector.load %arg6[%c0_63, %c0_64, %c0_65] : memref<1x8x384xf32, #tpu.memory_space<vmem>>, vector<1x8x384xf32>
    %91 = vector.shape_cast %90 : vector<1x8x384xf32> to vector<8x384xf32>
    %92 = vector.shape_cast %89 : vector<8x384xf32> to vector<1x8x384xf32>
    tpu.vector_store %arg6[%c0_63, %c0_64, %c0_65], %92 {strides = array<i32>} : memref<1x8x384xf32, #tpu.memory_space<vmem>>, vector<1x8x384xf32>,
    return
  }
  func.func @transform_0(%arg0: i32) -> (i32, i32, i32) {
    %c0_i32 = arith.constant 0 : i32
    %c0_i32_0 = arith.constant 0 : i32
    %c0_i32_1 = arith.constant 0 : i32
    return %arg0, %c0_i32, %c0_i32_0 : i32, i32, i32
  }
  func.func @transform_1(%arg0: i32) -> (i32, i32, i32) {
    %c0_i32 = arith.constant 0 : i32
    %c0_i32_0 = arith.constant 0 : i32
    %c0_i32_1 = arith.constant 0 : i32
    %c0_i32_2 = arith.constant 0 : i32
    return %c0_i32, %c0_i32_0, %c0_i32_1 : i32, i32, i32
  }
  func.func @transform_2(%arg0: i32) -> (i32, i32) {
    %c0_i32 = arith.constant 0 : i32
    %c0_i32_0 = arith.constant 0 : i32
    %c0_i32_1 = arith.constant 0 : i32
    return %c0_i32, %c0_i32_0 : i32, i32
  }
  func.func @transform_3(%arg0: i32) -> (i32, i32) {
    %c0_i32 = arith.constant 0 : i32
    %c0_i32_0 = arith.constant 0 : i32
    %c0_i32_1 = arith.constant 0 : i32
    return %c0_i32, %c0_i32_0 : i32, i32
  }
  func.func @transform_4(%arg0: i32) -> (i32, i32) {
    %c0_i32 = arith.constant 0 : i32
    %c0_i32_0 = arith.constant 0 : i32
    %c0_i32_1 = arith.constant 0 : i32
    return %c0_i32, %c0_i32_0 : i32, i32
  }
  func.func @transform_5(%arg0: i32) -> (i32, i32, i32) {
    %c0_i32 = arith.constant 0 : i32
    %c0_i32_0 = arith.constant 0 : i32
    %c0_i32_1 = arith.constant 0 : i32
    return %arg0, %c0_i32, %c0_i32_0 : i32, i32, i32
  }
}

</mosaic_0001>

<llo_original>
// kernel: conv_block_forward.1
$region0: #{conv_block_forward.1}
  #allocation0 [shape = 'u32[]', space=smem, size = 0x4, offset = 0x4, fixed_abs, tag = 'smem constant byte address 0x4 - core index']
  #allocation1 [shape = 'u32[144,128]{1,0:T(1,128)}', space=vmem, size = 0x12000, scoped, tag = 'internal scratch']
  %s0 = inlined_call_operand.vmem [shape: bf16[2,4,512], index: 0, kind: input, shape index: {}]
  %s1 = inlined_call_operand.vmem [shape: bf16[9,8,4], index: 1, kind: input, shape index: {}]
  %s2 = inlined_call_operand.vmem [shape: bf16[8,8], index: 2, kind: input, shape index: {}]
  %s3 = inlined_call_operand.vmem [shape: f32[8,1], index: 3, kind: input, shape index: {}]
  %s4 = inlined_call_operand.vmem [shape: f32[1,384], index: 4, kind: input, shape index: {}]
  %s5 = inlined_call_operand.vmem [shape: f32[2,8,384], index: 5, kind: output, shape index: {}]
  %s6 = sld [smem:[#allocation0]]
  $region53: #{conv_block_forward.1} parent=0
    _
  %s8 = ssub.s32 1, %s6
  %s9 = scalar_select 0, %s8, %s6
  loop: start=0, step=1, limit=4
  $region2: #{conv_block_forward.1} parent=0 // loop_pre_header
    _
  $region3: #{conv_block_forward.1} parent=0 // loop_header
    %s11 = sphi 0, %s15
    %p12 = scmp.ge.s32.totalorder %s11, 4
    %s21 = sphi 0, %s23
    %s24 = sphi 0, %s21
    %s25 = sphi 0, %s24
    %s41 = sphi 0, %s25
    %s45 = sphi 0, %s45
    %s47 = sphi 0, %s45
    %s48 = sphi 0, %s47
    %s62 = sphi 0, %s48
    %s66 = sphi 0, %s66
    %s68 = sphi 0, %s66
    %s69 = sphi 0, %s68
    %s83 = sphi 0, %s69
    %s87 = sphi 0, %s87
    %s89 = sphi 0, %s87
    %s90 = sphi 0, %s89
    %s104 = sphi 0, %s90
    %s108 = sphi 0, %s108
    %s110 = sphi 0, %s108
    %s111 = sphi 0, %s110
    %s125 = sphi 0, %s111
    %s131 = sphi 0, %s133
    %s134 = sphi 0, %s131
    %s135 = sphi 0, %s134
    %s151 = sphi 0, %s135
  $region4: #{conv_block_forward.1} parent=0 // loop_header_branch
    %14 = sbr.rel (%p12) target = $region8
  $region5: #{conv_block_forward.1} parent=0 // loop_body
    %s16 = ssub.s32 %s11, 1
    %s17 = ssub.s32 %s11, 2
    %s18 = sadd.s32 %s11, 1
    %s19 = ssub.s32 %s11, %s18
    %p20 = scmp.eq.s32.totalorder %s19, 0
    %s22 = sadd.s32 %s21, 1
    %s23 = scalar_select %p20, %s21, %s22
    %p26 = pneg %p20
    %p27 = scmp.eq.s32.totalorder %s11, 1
    %p28 = por %p26, %p27
    %p29 = scmp.ne.s32.totalorder %s21, %s24
    %p30 = scmp.eq.s32.totalorder %s11, 0
    %p31 = por %p29, %p30
    %p32 = scmp.ne.s32.totalorder %s21, %s24
    %p33 = scmp.eq.s32.totalorder %s16, 1
    %p34 = por %p32, %p33
    %p35 = scmp.ne.s32.totalorder %s24, %s25
    %p36 = scmp.eq.s32.totalorder %s16, 0
    %p37 = por %p35, %p36
    %p38 = scmp.ne.s32.totalorder %s24, %s25
    %p39 = scmp.eq.s32.totalorder %s17, 1
    %p40 = por %p38, %p39
    %p42 = scmp.ne.s32.totalorder %s25, %s41
    %p43 = scmp.eq.s32.totalorder %s17, 0
    %p44 = por %p42, %p43
    %s46 = sadd.s32 %s45, 1
    %p49 = scmp.eq.s32.totalorder %s11, 1
    %p50 = scmp.ne.s32.totalorder %s45, %s47
    %p51 = scmp.eq.s32.totalorder %s11, 0
    %p52 = por %p50, %p51
    %p53 = scmp.ne.s32.totalorder %s45, %s47
    %p54 = scmp.eq.s32.totalorder %s16, 1
    %p55 = por %p53, %p54
    %p56 = scmp.ne.s32.totalorder %s47, %s48
    %p57 = scmp.eq.s32.totalorder %s16, 0
    %p58 = por %p56, %p57
    %p59 = scmp.ne.s32.totalorder %s47, %s48
    %p60 = scmp.eq.s32.totalorder %s17, 1
    %p61 = por %p59, %p60
    %p63 = scmp.ne.s32.totalorder %s48, %s62
    %p64 = scmp.eq.s32.totalorder %s17, 0
    %p65 = por %p63, %p64
    %s67 = sadd.s32 %s66, 1
    %p70 = scmp.eq.s32.totalorder %s11, 1
    %p71 = scmp.ne.s32.totalorder %s66, %s68
    %p72 = scmp.eq.s32.totalorder %s11, 0
    %p73 = por %p71, %p72
    %p74 = scmp.ne.s32.totalorder %s66, %s68
    %p75 = scmp.eq.s32.totalorder %s16, 1
    %p76 = por %p74, %p75
    %p77 = scmp.ne.s32.totalorder %s68, %s69
    %p78 = scmp.eq.s32.totalorder %s16, 0
    %p79 = por %p77, %p78
    %p80 = scmp.ne.s32.totalorder %s68, %s69
    %p81 = scmp.eq.s32.totalorder %s17, 1
    %p82 = por %p80, %p81
    %p84 = scmp.ne.s32.totalorder %s69, %s83
    %p85 = scmp.eq.s32.totalorder %s17, 0
    %p86 = por %p84, %p85
    %s88 = sadd.s32 %s87, 1
    %p91 = scmp.eq.s32.totalorder %s11, 1
    %p92 = scmp.ne.s32.totalorder %s87, %s89
    %p93 = scmp.eq.s32.totalorder %s11, 0
    %p94 = por %p92, %p93
    %p95 = scmp.ne.s32.totalorder %s87, %s89
    %p96 = scmp.eq.s32.totalorder %s16, 1
    %p97 = por %p95, %p96
    %p98 = scmp.ne.s32.totalorder %s89, %s90
    %p99 = scmp.eq.s32.totalorder %s16, 0
    %p100 = por %p98, %p99
    %p101 = scmp.ne.s32.totalorder %s89, %s90
    %p102 = scmp.eq.s32.totalorder %s17, 1
    %p103 = por %p101, %p102
    %p105 = scmp.ne.s32.totalorder %s90, %s104
    %p106 = scmp.eq.s32.totalorder %s17, 0
    %p107 = por %p105, %p106
    %s109 = sadd.s32 %s108, 1
    %p112 = scmp.eq.s32.totalorder %s11, 1
    %p113 = scmp.ne.s32.totalorder %s108, %s110
    %p114 = scmp.eq.s32.totalorder %s11, 0
    %p115 = por %p113, %p114
    %p116 = scmp.ne.s32.totalorder %s108, %s110
    %p117 = scmp.eq.s32.totalorder %s16, 1
    %p118 = por %p116, %p117
    %p119 = scmp.ne.s32.totalorder %s110, %s111
    %p120 = scmp.eq.s32.totalorder %s16, 0
    %p121 = por %p119, %p120
    %p122 = scmp.ne.s32.totalorder %s110, %s111
    %p123 = scmp.eq.s32.totalorder %s17, 1
    %p124 = por %p122, %p123
    %p126 = scmp.ne.s32.totalorder %s111, %s125
    %p127 = scmp.eq.s32.totalorder %s17, 0
    %p128 = por %p126, %p127
    %s129 = ssub.s32 %s11, %s18
    %p130 = scmp.eq.s32.totalorder %s129, 0
    %s132 = sadd.s32 %s131, 1
    %s133 = scalar_select %p130, %s131, %s132
    %p136 = pneg %p130
    %p137 = scmp.eq.s32.totalorder %s11, 1
    %p138 = por %p136, %p137
    %p139 = scmp.ne.s32.totalorder %s131, %s134
    %p140 = scmp.eq.s32.totalorder %s11, 0
    %p141 = por %p139, %p140
    %p142 = scmp.ne.s32.totalorder %s131, %s134
    %p143 = scmp.eq.s32.totalorder %s16, 1
    %p144 = por %p142, %p143
    %p145 = scmp.ne.s32.totalorder %s134, %s135
    %p146 = scmp.eq.s32.totalorder %s16, 0
    %p147 = por %p145, %p146
    %p148 = scmp.ne.s32.totalorder %s134, %s135
    %p149 = scmp.eq.s32.totalorder %s17, 1
    %p150 = por %p148, %p149
    %p152 = scmp.ne.s32.totalorder %s135, %s151
    %p153 = scmp.eq.s32.totalorder %s17, 0
    %p154 = por %p152, %p153
    %p155 = scmp.le.s32.totalorder 1, %s11
    %p156 = scmp.lt.s32.totalorder %s11, 3
    %p157 = pnand %p155, %p156
    %p158 = pneg %p157
    // Predicated region
    $region9: #{conv_block_forward.1} parent=5 // pred_check
      _
    $region10: #{conv_block_forward.1} parent=5 // pred_check_branch
      %160 = sbr.rel (%p157) target = $region12
    $region11: #{conv_block_forward.1} parent=5 // pred_region
      %s161 = ssub.s32 %s11, 1
      // Predicated region
      $region13: #{conv_block_forward.1} parent=11 // pred_check
        %p162 = pneg %p58
      $region14: #{conv_block_forward.1} parent=11 // pred_check_branch
        %164 = sbr.rel (%p162) target = $region16
      $region15: #{conv_block_forward.1} parent=11 // pred_region
        _
      $region16: #{conv_block_forward.1} parent=11 // pred_fallthru
        _
      // Predicated region
      $region17: #{conv_block_forward.1} parent=11 // pred_check
        %p165 = pneg %p79
      $region18: #{conv_block_forward.1} parent=11 // pred_check_branch
        %167 = sbr.rel (%p165) target = $region20
      $region19: #{conv_block_forward.1} parent=11 // pred_region
        _
      $region20: #{conv_block_forward.1} parent=11 // pred_fallthru
        _
      // Predicated region
      $region21: #{conv_block_forward.1} parent=11 // pred_check
        %p168 = pneg %p100
      $region22: #{conv_block_forward.1} parent=11 // pred_check_branch
        %170 = sbr.rel (%p168) target = $region24
      $region23: #{conv_block_forward.1} parent=11 // pred_region
        _
      $region24: #{conv_block_forward.1} parent=11 // pred_fallthru
        _
      // Predicated region
      $region25: #{conv_block_forward.1} parent=11 // pred_check
        %p171 = pneg %p121
      $region26: #{conv_block_forward.1} parent=11 // pred_check_branch
        %173 = sbr.rel (%p171) target = $region28
      $region27: #{conv_block_forward.1} parent=11 // pred_region
        _
      $region28: #{conv_block_forward.1} parent=11 // pred_fallthru
        _
    $region12: #{conv_block_forward.1} parent=5 // pred_fallthru
      _
    %p174 = scmp.lt.s32.totalorder %s11, 2
    // Predicated region
    $region29: #{conv_block_forward.1} parent=5 // pred_check
      %p175 = pneg %p174
    $region30: #{conv_block_forward.1} parent=5 // pred_check_branch
      %177 = sbr.rel (%p175) target = $region32
    $region31: #{conv_block_forward.1} parent=5 // pred_region
      // Predicated region
      $region33: #{conv_block_forward.1} parent=31 // pred_check
        %p178 = pneg %p31
      $region34: #{conv_block_forward.1} parent=31 // pred_check_branch
        %180 = sbr.rel (%p178) target = $region36
      $region35: #{conv_block_forward.1} parent=31 // pred_region
        %p181 = scmp.lt.s32.totalorder %s11, 1
        %s182 = scalar_select %p181, %s11, 1
        %s183 = smul.addr %s182, 4
        %s184 = smul.addr %s183, 2
        %s185 = scalar_lea.vmem %s0, %s184
      $region36: #{conv_block_forward.1} parent=31 // pred_fallthru
        _
    $region32: #{conv_block_forward.1} parent=5 // pred_fallthru
      _
    %p186 = scmp.le.s32.totalorder 1, %s11
    %p187 = scmp.lt.s32.totalorder %s11, 3
    %p188 = pnand %p186, %p187
    %p189 = pneg %p188
    // Predicated region
    $region37: #{conv_block_forward.1} parent=5 // pred_check
      _
    $region38: #{conv_block_forward.1} parent=5 // pred_check_branch
      %191 = sbr.rel (%p188) target = $region40
    $region39: #{conv_block_forward.1} parent=5 // pred_region
      %s192 = ssub.s32 %s11, 1
      %p193 = scmp.lt.s32.totalorder %s16, 1
      %s194 = scalar_select %p193, %s16, 1
      %s195 = smul.addr %s194, 4
      %s196 = smul.addr %s195, 2
      %s197 = scalar_lea.vmem %s0, %s196
      %p198 = pneg %p37
      %p199 = pneg %p34
      %p200 = pneg %p58
      %p201 = pneg %p55
      %p202 = pneg %p79
      %p203 = pneg %p76
      %p204 = pneg %p100
      %p205 = pneg %p97
      %p206 = pneg %p121
      %p207 = pneg %p118
      %p208 = pneg %p147
      %p209 = pneg %p144
      %p210 = scmp.lt.s32.totalorder %s16, 1
      %s211 = scalar_select %p210, %s16, 1
      %s212 = smul.addr %s211, 3
      %s213 = smul.addr %s212, 8
      %s214 = scalar_lea.vmem %s5, %s213
      %p215 = scmp.lt.s32.totalorder %s16, 1
      %s216 = scalar_select %p215, %s16, 1
      %s217 = smul.addr %s216, 4
      %s218 = smul.addr %s217, 2
      %s219 = scalar_lea.vmem %s0, %s218
      %p220 = scmp.lt.s32.totalorder %s16, 1
      %s221 = scalar_select %p220, %s16, 1
      %s222 = smul.addr %s221, 3
      %s223 = smul.addr %s222, 8
      %s224 = scalar_lea.vmem %s5, %s223
      %v226 = vld [vmem:[%s1] sm:$0xf]
      %v227 = vld [vmem:[%s219] sm:$0x3f]
      %s228 = scalar_lea.vmem %s1, 4
      %v229 = vld [vmem:[%s228] sm:$0xf]
      %v230 = vld [vmem:[%s219] sm:$0xff]
      %v232 = vcombine.high %v230, %v230
      %v234 = vunpack.c.l.s4 1983009808
      %v235 = vunpack.c.0.s8 %v234
      %v236 = vlaneseq
      %v237 = vshrl.u32 %v236, 7
      %v238 = vsub.s32 %v235, %v237
      %v239 = vrot.slane %v230, %v238
      %v241 = vunpack.c.l.s4 1983009808
      %v242 = vunpack.c.0.s8 %v241
      %v243 = vlaneseq
      %v244 = vshrl.u32 %v243, 7
      %v245 = vsub.s32 %v242, %v244
      %v246 = vrot.slane %v232, %v245
      %v247 = vcombine.high %v239, %v239
      %v248 = vcombine.high %v246, %v246
      %249 = vrot.lane.b32.xlu0 %v239, 127
      %v250 = vpop.permute.xlu0 %249
      %251 = vrot.lane.b32.xlu0 %v247, 127
      %v252 = vpop.permute.xlu0 %251
      %253 = vrot.lane.b32.xlu0 %v246, 127
      %v254 = vpop.permute.xlu0 %253
      %255 = vrot.lane.b32.xlu0 %v248, 127
      %v256 = vpop.permute.xlu0 %255
      %vm257 = vcmask 1039360
      %v258 = vsel %vm257, %v250, %v252
      %v259 = vsel %vm257, %v252, %v254
      %v260 = vsel %vm257, %v254, %v256
      %vm261 = vcmask 31744
      %v263 = vsel %vm261, %v229, 0
      %vm265 = vcmask 1041408
      %v267 = vsel %vm265, %v258, 0
      %v270 = vsel %vm265, %v259, 0
      %v273 = vsel %vm265, %v260, 0
      %275 = vmatprep.subr.bf16.mxu0 %v270
      %276 = vmatpush1.bf16.msra.mxu0 %v267
      %277 = vmatprep.subr.bf16.mxu0 0
      %278 = vmatpush1.bf16.msra.mxu0 0
      %279 = vmatprep.subr.bf16.mxu0 0
      %280 = vmatpush1.bf16.msra.mxu0 0
      %281 = vmatprep.subr.bf16.mxu0 0
      %282 = vmatpush1.bf16.msra.mxu0 0
      %283 = vmatprep.subr.bf16.mxu0 0
      %284 = vmatpush1.bf16.msra.mxu0 0
      %285 = vmatprep.subr.bf16.mxu0 0
      %286 = vmatpush1.bf16.msra.mxu0 0
      %287 = vmatprep.subr.bf16.mxu0 0
      %288 = vmatpush1.bf16.msra.mxu0 0
      %289 = vmatprep.subr.bf16.mxu0 0
      %290 = vmatpush1.bf16.msra.mxu0 0
      %291 = vmatprep.subr.bf16.mxu0 0
      %292 = vmatpush1.bf16.msra.mxu0 0
      %293 = vmatprep.subr.bf16.mxu0 0
      %294 = vmatpush1.bf16.msra.mxu0 0
      %295 = vmatprep.subr.bf16.mxu0 0
      %296 = vmatpush1.bf16.msra.mxu0 0
      %297 = vmatprep.subr.bf16.mxu0 0
      %298 = vmatpush1.bf16.msra.mxu0 0
      %299 = vmatprep.subr.bf16.mxu0 0
      %300 = vmatpush1.bf16.msra.mxu0 0
      %301 = vmatprep.subr.bf16.mxu0 0
      %302 = vmatpush1.bf16.msra.mxu0 0
      %303 = vmatprep.subr.bf16.mxu0 0
      %304 = vmatpush1.bf16.msra.mxu0 0
      %305 = vmatprep.subr.bf16.mxu0 0
      %306 = vmatpush1.bf16.msra.mxu0 0
      %307 = vmatprep.mubr.bf16.mxu0 0
      %308 = vmatmul.mubr.bf16.gmra.mrb[0].mxu0 %v263
      %v309 = vpop.f32.mrb[0].mxu0
      %v310 = vadd.f32 0.0, %v309
      %v311 = vpop.f32.mrb[0].mxu0
      %v312 = vadd.f32 0.0, %v311
      %v313 = vpop.f32.mrb[0].mxu0
      %v314 = vpop.f32.mrb[0].mxu0
      %315 = vdwg.mxu0
      %316 = vmatprep.subr.bf16.mxu0 0
      %317 = vmatpush1.bf16.msra.mxu0 %v273
      %318 = vmatprep.subr.bf16.mxu0 0
      %319 = vmatpush1.bf16.msra.mxu0 0
      %320 = vmatprep.subr.bf16.mxu0 0
      %321 = vmatpush1.bf16.msra.mxu0 0
      %322 = vmatprep.subr.bf16.mxu0 0
      %323 = vmatpush1.bf16.msra.mxu0 0
      %324 = vmatprep.subr.bf16.mxu0 0
      %325 = vmatpush1.bf16.msra.mxu0 0
      %326 = vmatprep.subr.bf16.mxu0 0
      %327 = vmatpush1.bf16.msra.mxu0 0
      %328 = vmatprep.subr.bf16.mxu0 0
      %329 = vmatpush1.bf16.msra.mxu0 0
      %330 = vmatprep.subr.bf16.mxu0 0
      %331 = vmatpush1.bf16.msra.mxu0 0
      %332 = vmatprep.subr.bf16.mxu0 0
      %333 = vmatpush1.bf16.msra.mxu0 0
      %334 = vmatprep.subr.bf16.mxu0 0
      %335 = vmatpush1.bf16.msra.mxu0 0
      %336 = vmatprep.subr.bf16.mxu0 0
      %337 = vmatpush1.bf16.msra.mxu0 0
      %338 = vmatprep.subr.bf16.mxu0 0
      %339 = vmatpush1.bf16.msra.mxu0 0
      %340 = vmatprep.subr.bf16.mxu0 0
      %341 = vmatpush1.bf16.msra.mxu0 0
      %342 = vmatprep.subr.bf16.mxu0 0
      %343 = vmatpush1.bf16.msra.mxu0 0
      %344 = vmatprep.subr.bf16.mxu0 0
      %345 = vmatpush1.bf16.msra.mxu0 0
      %346 = vmatprep.subr.bf16.mxu0 0
      %347 = vmatpush1.bf16.msra.mxu0 0
      %348 = vmatprep.mubr.bf16.mxu0 0
      %349 = vmatmul.mubr.bf16.gmra.mrb[0].mxu0 %v263
      %v350 = vpop.f32.mrb[0].mxu0
      %v351 = vadd.f32 0.0, %v350
      %v352 = vpop.f32.mrb[0].mxu0
      %v353 = vpop.f32.mrb[0].mxu0
      %v354 = vpop.f32.mrb[0].mxu0
      %355 = vdwg.mxu0
      %v357 = vcombine.high %v227, %v227
      %v359 = vunpack.c.l.s4 1983009808
      %v360 = vunpack.c.0.s8 %v359
      %v361 = vlaneseq
      %v362 = vshrl.u32 %v361, 7
      %v363 = vsub.s32 %v360, %v362
      %v364 = vrot.slane %v227, %v363
      %v366 = vunpack.c.l.s4 1983009808
      %v367 = vunpack.c.0.s8 %v366
      %v368 = vlaneseq
      %v369 = vshrl.u32 %v368, 7
      %v370 = vsub.s32 %v367, %v369
      %v371 = vrot.slane %v357, %v370
      %v372 = vcombine.high %v364, %v364
      %v374 = vsel %vm261, %v226, 0
      %v377 = vsel %vm265, %v364, 0
      %v380 = vsel %vm265, %v372, 0
      %v383 = vsel %vm265, %v371, 0
      %385 = vmatprep.subr.bf16.mxu0 %v380
      %386 = vmatpush1.bf16.msra.mxu0 %v377
      %387 = vmatprep.subr.bf16.mxu0 0
      %388 = vmatpush1.bf16.msra.mxu0 0
      %389 = vmatprep.subr.bf16.mxu0 0
      %390 = vmatpush1.bf16.msra.mxu0 0
      %391 = vmatprep.subr.bf16.mxu0 0
      %392 = vmatpush1.bf16.msra.mxu0 0
      %393 = vmatprep.subr.bf16.mxu0 0
      %394 = vmatpush1.bf16.msra.mxu0 0
      %395 = vmatprep.subr.bf16.mxu0 0
      %396 = vmatpush1.bf16.msra.mxu0 0
      %397 = vmatprep.subr.bf16.mxu0 0
      %398 = vmatpush1.bf16.msra.mxu0 0
      %399 = vmatprep.subr.bf16.mxu0 0
      %400 = vmatpush1.bf16.msra.mxu0 0
      %401 = vmatprep.subr.bf16.mxu0 0
      %402 = vmatpush1.bf16.msra.mxu0 0
      %403 = vmatprep.subr.bf16.mxu0 0
      %404 = vmatpush1.bf16.msra.mxu0 0
      %405 = vmatprep.subr.bf16.mxu0 0
      %406 = vmatpush1.bf16.msra.mxu0 0
      %407 = vmatprep.subr.bf16.mxu0 0
      %408 = vmatpush1.bf16.msra.mxu0 0
      %409 = vmatprep.subr.bf16.mxu0 0
      %410 = vmatpush1.bf16.msra.mxu0 0
      %411 = vmatprep.subr.bf16.mxu0 0
      %412 = vmatpush1.bf16.msra.mxu0 0
      %413 = vmatprep.subr.bf16.mxu0 0
      %414 = vmatpush1.bf16.msra.mxu0 0
      %415 = vmatprep.subr.bf16.mxu0 0
      %416 = vmatpush1.bf16.msra.mxu0 0
      %417 = vmatprep.mubr.bf16.mxu0 0
      %418 = vmatmul.mubr.bf16.gmra.mrb[0].mxu0 %v374
      %v419 = vpop.f32.mrb[0].mxu0
      %v420 = vadd.f32 %v310, %v419
      %v421 = vpop.f32.mrb[0].mxu0
      %v422 = vadd.f32 %v312, %v421
      %v423 = vpop.f32.mrb[0].mxu0
      %v424 = vpop.f32.mrb[0].mxu0
      %425 = vdwg.mxu0
      %426 = vmatprep.subr.bf16.mxu0 0
      %427 = vmatpush1.bf16.msra.mxu0 %v383
      %428 = vmatprep.subr.bf16.mxu0 0
      %429 = vmatpush1.bf16.msra.mxu0 0
      %430 = vmatprep.subr.bf16.mxu0 0
      %431 = vmatpush1.bf16.msra.mxu0 0
      %432 = vmatprep.subr.bf16.mxu0 0
      %433 = vmatpush1.bf16.msra.mxu0 0
      %434 = vmatprep.subr.bf16.mxu0 0
      %435 = vmatpush1.bf16.msra.mxu0 0
      %436 = vmatprep.subr.bf16.mxu0 0
      %437 = vmatpush1.bf16.msra.mxu0 0
      %438 = vmatprep.subr.bf16.mxu0 0
      %439 = vmatpush1.bf16.msra.mxu0 0
      %440 = vmatprep.subr.bf16.mxu0 0
      %441 = vmatpush1.bf16.msra.mxu0 0
      %442 = vmatprep.subr.bf16.mxu0 0
      %443 = vmatpush1.bf16.msra.mxu0 0
      %444 = vmatprep.subr.bf16.mxu0 0
      %445 = vmatpush1.bf16.msra.mxu0 0
      %446 = vmatprep.subr.bf16.mxu0 0
      %447 = vmatpush1.bf16.msra.mxu0 0
      %448 = vmatprep.subr.bf16.mxu0 0
      %449 = vmatpush1.bf16.msra.mxu0 0
      %450 = vmatprep.subr.bf16.mxu0 0
      %451 = vmatpush1.bf16.msra.mxu0 0
      %452 = vmatprep.subr.bf16.mxu0 0
      %453 = vmatpush1.bf16.msra.mxu0 0
      %454 = vmatprep.subr.bf16.mxu0 0
      %455 = vmatpush1.bf16.msra.mxu0 0
      %456 = vmatprep.subr.bf16.mxu0 0
      %457 = vmatpush1.bf16.msra.mxu0 0
      %458 = vmatprep.mubr.bf16.mxu0 0
      %459 = vmatmul.mubr.bf16.gmra.mrb[0].mxu0 %v374
      %v460 = vpop.f32.mrb[0].mxu0
      %v461 = vadd.f32 %v351, %v460
      %v462 = vpop.f32.mrb[0].mxu0
      %v463 = vpop.f32.mrb[0].mxu0
      %v464 = vpop.f32.mrb[0].mxu0
      %465 = vdwg.mxu0
      %s466 = scalar_lea.vmem %s1, 8
      %v467 = vld [vmem:[%s466] sm:$0xf]
      %v468 = vld [vmem:[%s219] sm:$0xff]
      %v470 = vcombine.high %v468, %v468
      %v472 = vunpack.c.l.s4 1983009808
      %v473 = vunpack.c.0.s8 %v472
      %v474 = vlaneseq
      %v475 = vshrl.u32 %v474, 7
      %v476 = vsub.s32 %v473, %v475
      %v477 = vrot.slane %v468, %v476
      %v479 = vunpack.c.l.s4 1983009808
      %v480 = vunpack.c.0.s8 %v479
      %v481 = vlaneseq
      %v482 = vshrl.u32 %v481, 7
      %v483 = vsub.s32 %v480, %v482
      %v484 = vrot.slane %v470, %v483
      %v485 = vcombine.high %v477, %v477
      %v486 = vcombine.high %v484, %v484
      %487 = vrot.lane.b32.xlu0 %v477, 126
      %v488 = vpop.permute.xlu0 %487
      %489 = vrot.lane.b32.xlu0 %v485, 126
      %v490 = vpop.permute.xlu0 %489
      %491 = vrot.lane.b32.xlu0 %v484, 126
      %v492 = vpop.permute.xlu0 %491
      %493 = vrot.lane.b32.xlu0 %v486, 126
      %v494 = vpop.permute.xlu0 %493
      %vm495 = vcmask 1031168
      %v496 = vsel %vm495, %v488, %v490
      %v497 = vsel %vm495, %v490, %v492
      %v498 = vsel %vm495, %v492, %v494
      %v500 = vsel %vm261, %v467, 0
      %v503 = vsel %vm265, %v496, 0
      %v506 = vsel %vm265, %v497, 0
      %v509 = vsel %vm265, %v498, 0
      %511 = vmatprep.subr.bf16.mxu0 %v506
      %512 = vmatpush1.bf16.msra.mxu0 %v503
      %513 = vmatprep.subr.bf16.mxu0 0
      %514 = vmatpush1.bf16.msra.mxu0 0
      %515 = vmatprep.subr.bf16.mxu0 0
      %516 = vmatpush1.bf16.msra.mxu0 0
      %517 = vmatprep.subr.bf16.mxu0 0
      %518 = vmatpush1.bf16.msra.mxu0 0
      %519 = vmatprep.subr.bf16.mxu0 0
      %520 = vmatpush1.bf16.msra.mxu0 0
      %521 = vmatprep.subr.bf16.mxu0 0
      %522 = vmatpush1.bf16.msra.mxu0 0
      %523 = vmatprep.subr.bf16.mxu0 0
      %524 = vmatpush1.bf16.msra.mxu0 0
      %525 = vmatprep.subr.bf16.mxu0 0
      %526 = vmatpush1.bf16.msra.mxu0 0
      %527 = vmatprep.subr.bf16.mxu0 0
      %528 = vmatpush1.bf16.msra.mxu0 0
      %529 = vmatprep.subr.bf16.mxu0 0
      %530 = vmatpush1.bf16.msra.mxu0 0
      %531 = vmatprep.subr.bf16.mxu0 0
      %532 = vmatpush1.bf16.msra.mxu0 0
      %533 = vmatprep.subr.bf16.mxu0 0
      %534 = vmatpush1.bf16.msra.mxu0 0
      %535 = vmatprep.subr.bf16.mxu0 0
      %536 = vmatpush1.bf16.msra.mxu0 0
      %537 = vmatprep.subr.bf16.mxu0 0
      %538 = vmatpush1.bf16.msra.mxu0 0
      %539 = vmatprep.subr.bf16.mxu0 0
      %540 = vmatpush1.bf16.msra.mxu0 0
      %541 = vmatprep.subr.bf16.mxu0 0
      %542 = vmatpush1.bf16.msra.mxu0 0
      %543 = vmatprep.mubr.bf16.mxu0 0
      %544 = vmatmul.mubr.bf16.gmra.mrb[0].mxu0 %v500
      %v545 = vpop.f32.mrb[0].mxu0
      %v546 = vadd.f32 0.0, %v545
      %v547 = vpop.f32.mrb[0].mxu0
      %v548 = vadd.f32 0.0, %v547
      %v549 = vpop.f32.mrb[0].mxu0
      %v550 = vpop.f32.mrb[0].mxu0
      %551 = vdwg.mxu0
      %552 = vmatprep.subr.bf16.mxu0 0
      %553 = vmatpush1.bf16.msra.mxu0 %v509
      %554 = vmatprep.subr.bf16.mxu0 0
      %555 = vmatpush1.bf16.msra.mxu0 0
      %556 = vmatprep.subr.bf16.mxu0 0
      %557 = vmatpush1.bf16.msra.mxu0 0
      %558 = vmatprep.subr.bf16.mxu0 0
      %559 = vmatpush1.bf16.msra.mxu0 0
      %560 = vmatprep.subr.bf16.mxu0 0
      %561 = vmatpush1.bf16.msra.mxu0 0
      %562 = vmatprep.subr.bf16.mxu0 0
      %563 = vmatpush1.bf16.msra.mxu0 0
      %564 = vmatprep.subr.bf16.mxu0 0
      %565 = vmatpush1.bf16.msra.mxu0 0
      %566 = vmatprep.subr.bf16.mxu0 0
      %567 = vmatpush1.bf16.msra.mxu0 0
      %568 = vmatprep.subr.bf16.mxu0 0
      %569 = vmatpush1.bf16.msra.mxu0 0
      %570 = vmatprep.subr.bf16.mxu0 0
      %571 = vmatpush1.bf16.msra.mxu0 0
      %572 = vmatprep.subr.bf16.mxu0 0
      %573 = vmatpush1.bf16.msra.mxu0 0
      %574 = vmatprep.subr.bf16.mxu0 0
      %575 = vmatpush1.bf16.msra.mxu0 0
      %576 = vmatprep.subr.bf16.mxu0 0
      %577 = vmatpush1.bf16.msra.mxu0 0
      %578 = vmatprep.subr.bf16.mxu0 0
      %579 = vmatpush1.bf16.msra.mxu0 0
      %580 = vmatprep.subr.bf16.mxu0 0
      %581 = vmatpush1.bf16.msra.mxu0 0
      %582 = vmatprep.subr.bf16.mxu0 0
      %583 = vmatpush1.bf16.msra.mxu0 0
      %584 = vmatprep.mubr.bf16.mxu0 0
      %585 = vmatmul.mubr.bf16.gmra.mrb[0].mxu0 %v500
      %v586 = vpop.f32.mrb[0].mxu0
      %v587 = vadd.f32 0.0, %v586
      %v588 = vpop.f32.mrb[0].mxu0
      %v589 = vpop.f32.mrb[0].mxu0
      %v590 = vpop.f32.mrb[0].mxu0
      %591 = vdwg.mxu0
      %v592 = vadd.f32 %v420, %v546
      %v593 = vadd.f32 %v422, %v548
      %v594 = vadd.f32 %v461, %v587
      %s595 = scalar_lea.vmem %s1, 12
      %v596 = vld [vmem:[%s595] sm:$0xf]
      %v597 = vld [vmem:[%s219] sm:$0xff]
      %v599 = vcombine.high %v597, %v597
      %v601 = vunpack.c.l.s4 1983009808
      %v602 = vunpack.c.0.s8 %v601
      %v603 = vlaneseq
      %v604 = vshrl.u32 %v603, 7
      %v605 = vsub.s32 %v602, %v604
      %v606 = vrot.slane %v597, %v605
      %v608 = vunpack.c.l.s4 1983009808
      %v609 = vunpack.c.0.s8 %v608
      %v610 = vlaneseq
      %v611 = vshrl.u32 %v610, 7
      %v612 = vsub.s32 %v609, %v611
      %v613 = vrot.slane %v599, %v612
      %v614 = vcombine.high %v606, %v606
      %v615 = vcombine.high %v613, %v613
      %616 = vrot.lane.b32.xlu0 %v606, 110
      %v617 = vpop.permute.xlu0 %616
      %618 = vrot.lane.b32.xlu0 %v614, 110
      %v619 = vpop.permute.xlu0 %618
      %620 = vrot.lane.b32.xlu0 %v613, 110
      %v621 = vpop.permute.xlu0 %620
      %622 = vrot.lane.b32.xlu0 %v615, 110
      %v623 = vpop.permute.xlu0 %622
      %vm624 = vcmask 900096
      %v625 = vsel %vm624, %v617, %v619
      %v626 = vsel %vm624, %v619, %v621
      %v627 = vsel %vm624, %v621, %v623
      %v629 = vsel %vm261, %v596, 0
      %v632 = vsel %vm265, %v625, 0
      %v635 = vsel %vm265, %v626, 0
      %v638 = vsel %vm265, %v627, 0
      %640 = vmatprep.subr.bf16.mxu0 %v635
      %641 = vmatpush1.bf16.msra.mxu0 %v632
      %642 = vmatprep.subr.bf16.mxu0 0
      %643 = vmatpush1.bf16.msra.mxu0 0
      %644 = vmatprep.subr.bf16.mxu0 0
      %645 = vmatpush1.bf16.msra.mxu0 0
      %646 = vmatprep.subr.bf16.mxu0 0
      %647 = vmatpush1.bf16.msra.mxu0 0
      %648 = vmatprep.subr.bf16.mxu0 0
      %649 = vmatpush1.bf16.msra.mxu0 0
      %650 = vmatprep.subr.bf16.mxu0 0
      %651 = vmatpush1.bf16.msra.mxu0 0
      %652 = vmatprep.subr.bf16.mxu0 0
      %653 = vmatpush1.bf16.msra.mxu0 0
      %654 = vmatprep.subr.bf16.mxu0 0
      %655 = vmatpush1.bf16.msra.mxu0 0
      %656 = vmatprep.subr.bf16.mxu0 0
      %657 = vmatpush1.bf16.msra.mxu0 0
      %658 = vmatprep.subr.bf16.mxu0 0
      %659 = vmatpush1.bf16.msra.mxu0 0
      %660 = vmatprep.subr.bf16.mxu0 0
      %661 = vmatpush1.bf16.msra.mxu0 0
      %662 = vmatprep.subr.bf16.mxu0 0
      %663 = vmatpush1.bf16.msra.mxu0 0
      %664 = vmatprep.subr.bf16.mxu0 0
      %665 = vmatpush1.bf16.msra.mxu0 0
      %666 = vmatprep.subr.bf16.mxu0 0
      %667 = vmatpush1.bf16.msra.mxu0 0
      %668 = vmatprep.subr.bf16.mxu0 0
      %669 = vmatpush1.bf16.msra.mxu0 0
      %670 = vmatprep.subr.bf16.mxu0 0
      %671 = vmatpush1.bf16.msra.mxu0 0
      %672 = vmatprep.mubr.bf16.mxu0 0
      %673 = vmatmul.mubr.bf16.gmra.mrb[0].mxu0 %v629
      %v674 = vpop.f32.mrb[0].mxu0
      %v675 = vadd.f32 0.0, %v674
      %v676 = vpop.f32.mrb[0].mxu0
      %v677 = vadd.f32 0.0, %v676
      %v678 = vpop.f32.mrb[0].mxu0
      %v679 = vpop.f32.mrb[0].mxu0
      %680 = vdwg.mxu0
      %681 = vmatprep.subr.bf16.mxu0 0
      %682 = vmatpush1.bf16.msra.mxu0 %v638
      %683 = vmatprep.subr.bf16.mxu0 0
      %684 = vmatpush1.bf16.msra.mxu0 0
      %685 = vmatprep.subr.bf16.mxu0 0
      %686 = vmatpush1.bf16.msra.mxu0 0
      %687 = vmatprep.subr.bf16.mxu0 0
      %688 = vmatpush1.bf16.msra.mxu0 0
      %689 = vmatprep.subr.bf16.mxu0 0
      %690 = vmatpush1.bf16.msra.mxu0 0
      %691 = vmatprep.subr.bf16.mxu0 0
      %692 = vmatpush1.bf16.msra.mxu0 0
      %693 = vmatprep.subr.bf16.mxu0 0
      %694 = vmatpush1.bf16.msra.mxu0 0
      %695 = vmatprep.subr.bf16.mxu0 0
      %696 = vmatpush1.bf16.msra.mxu0 0
      %697 = vmatprep.subr.bf16.mxu0 0
      %698 = vmatpush1.bf16.msra.mxu0 0
      %699 = vmatprep.subr.bf16.mxu0 0
      %700 = vmatpush1.bf16.msra.mxu0 0
      %701 = vmatprep.subr.bf16.mxu0 0
      %702 = vmatpush1.bf16.msra.mxu0 0
      %703 = vmatprep.subr.bf16.mxu0 0
      %704 = vmatpush1.bf16.msra.mxu0 0
      %705 = vmatprep.subr.bf16.mxu0 0
      %706 = vmatpush1.bf16.msra.mxu0 0
      %707 = vmatprep.subr.bf16.mxu0 0
      %708 = vmatpush1.bf16.msra.mxu0 0
      %709 = vmatprep.subr.bf16.mxu0 0
      %710 = vmatpush1.bf16.msra.mxu0 0
      %711 = vmatprep.subr.bf16.mxu0 0
      %712 = vmatpush1.bf16.msra.mxu0 0
      %713 = vmatprep.mubr.bf16.mxu0 0
      %714 = vmatmul.mubr.bf16.gmra.mrb[0].mxu0 %v629
      %v715 = vpop.f32.mrb[0].mxu0
      %v716 = vadd.f32 0.0, %v715
      %v717 = vpop.f32.mrb[0].mxu0
      %v718 = vpop.f32.mrb[0].mxu0
      %v719 = vpop.f32.mrb[0].mxu0
      %720 = vdwg.mxu0
      %v721 = vadd.f32 %v592, %v675
      %v722 = vadd.f32 %v593, %v677
      %v723 = vadd.f32 %v594, %v716
      %s724 = scalar_lea.vmem %s1, 16
      %v725 = vld [vmem:[%s724] sm:$0xf]
      %v726 = vld [vmem:[%s219] sm:$0xff]
      %v728 = vcombine.high %v726, %v726
      %v730 = vunpack.c.l.s4 1983009808
      %v731 = vunpack.c.0.s8 %v730
      %v732 = vlaneseq
      %v733 = vshrl.u32 %v732, 7
      %v734 = vsub.s32 %v731, %v733
      %v735 = vrot.slane %v726, %v734
      %v737 = vunpack.c.l.s4 1983009808
      %v738 = vunpack.c.0.s8 %v737
      %v739 = vlaneseq
      %v740 = vshrl.u32 %v739, 7
      %v741 = vsub.s32 %v738, %v740
      %v742 = vrot.slane %v728, %v741
      %v743 = vcombine.high %v735, %v735
      %v744 = vcombine.high %v742, %v742
      %745 = vrot.lane.b32.xlu0 %v735, 109
      %v746 = vpop.permute.xlu0 %745
      %747 = vrot.lane.b32.xlu0 %v743, 109
      %v748 = vpop.permute.xlu0 %747
      %749 = vrot.lane.b32.xlu0 %v742, 109
      %v750 = vpop.permute.xlu0 %749
      %751 = vrot.lane.b32.xlu0 %v744, 109
      %v752 = vpop.permute.xlu0 %751
      %vm753 = vcmask 891904
      %v754 = vsel %vm753, %v746, %v748
      %v755 = vsel %vm753, %v748, %v750
      %v756 = vsel %vm753, %v750, %v752
      %v758 = vsel %vm261, %v725, 0
      %v761 = vsel %vm265, %v754, 0
      %v764 = vsel %vm265, %v755, 0
      %v767 = vsel %vm265, %v756, 0
      %769 = vmatprep.subr.bf16.mxu0 %v764
      %770 = vmatpush1.bf16.msra.mxu0 %v761
      %771 = vmatprep.subr.bf16.mxu0 0
      %772 = vmatpush1.bf16.msra.mxu0 0
      %773 = vmatprep.subr.bf16.mxu0 0
      %774 = vmatpush1.bf16.msra.mxu0 0
      %775 = vmatprep.subr.bf16.mxu0 0
      %776 = vmatpush1.bf16.msra.mxu0 0
      %777 = vmatprep.subr.bf16.mxu0 0
      %778 = vmatpush1.bf16.msra.mxu0 0
      %779 = vmatprep.subr.bf16.mxu0 0
      %780 = vmatpush1.bf16.msra.mxu0 0
      %781 = vmatprep.subr.bf16.mxu0 0
      %782 = vmatpush1.bf16.msra.mxu0 0
      %783 = vmatprep.subr.bf16.mxu0 0
      %784 = vmatpush1.bf16.msra.mxu0 0
      %785 = vmatprep.subr.bf16.mxu0 0
      %786 = vmatpush1.bf16.msra.mxu0 0
      %787 = vmatprep.subr.bf16.mxu0 0
      %788 = vmatpush1.bf16.msra.mxu0 0
      %789 = vmatprep.subr.bf16.mxu0 0
      %790 = vmatpush1.bf16.msra.mxu0 0
      %791 = vmatprep.subr.bf16.mxu0 0
      %792 = vmatpush1.bf16.msra.mxu0 0
      %793 = vmatprep.subr.bf16.mxu0 0
      %794 = vmatpush1.bf16.msra.mxu0 0
      %795 = vmatprep.subr.bf16.mxu0 0
      %796 = vmatpush1.bf16.msra.mxu0 0
      %797 = vmatprep.subr.bf16.mxu0 0
      %798 = vmatpush1.bf16.msra.mxu0 0
      %799 = vmatprep.subr.bf16.mxu0 0
      %800 = vmatpush1.bf16.msra.mxu0 0
      %801 = vmatprep.mubr.bf16.mxu0 0
      %802 = vmatmul.mubr.bf16.gmra.mrb[0].mxu0 %v758
      %v803 = vpop.f32.mrb[0].mxu0
      %v804 = vadd.f32 0.0, %v803
      %v805 = vpop.f32.mrb[0].mxu0
      %v806 = vadd.f32 0.0, %v805
      %v807 = vpop.f32.mrb[0].mxu0
      %v808 = vpop.f32.mrb[0].mxu0
      %809 = vdwg.mxu0
      %810 = vmatprep.subr.bf16.mxu0 0
      %811 = vmatpush1.bf16.msra.mxu0 %v767
      %812 = vmatprep.subr.bf16.mxu0 0
      %813 = vmatpush1.bf16.msra.mxu0 0
      %814 = vmatprep.subr.bf16.mxu0 0
      %815 = vmatpush1.bf16.msra.mxu0 0
      %816 = vmatprep.subr.bf16.mxu0 0
      %817 = vmatpush1.bf16.msra.mxu0 0
      %818 = vmatprep.subr.bf16.mxu0 0
      %819 = vmatpush1.bf16.msra.mxu0 0
      %820 = vmatprep.subr.bf16.mxu0 0
      %821 = vmatpush1.bf16.msra.mxu0 0
      %822 = vmatprep.subr.bf16.mxu0 0
      %823 = vmatpush1.bf16.msra.mxu0 0
      %824 = vmatprep.subr.bf16.mxu0 0
      %825 = vmatpush1.bf16.msra.mxu0 0
      %826 = vmatprep.subr.bf16.mxu0 0
      %827 = vmatpush1.bf16.msra.mxu0 0
      %828 = vmatprep.subr.bf16.mxu0 0
      %829 = vmatpush1.bf16.msra.mxu0 0
      %830 = vmatprep.subr.bf16.mxu0 0
      %831 = vmatpush1.bf16.msra.mxu0 0
      %832 = vmatprep.subr.bf16.mxu0 0
      %833 = vmatpush1.bf16.msra.mxu0 0
      %834 = vmatprep.subr.bf16.mxu0 0
      %835 = vmatpush1.bf16.msra.mxu0 0
      %836 = vmatprep.subr.bf16.mxu0 0
      %837 = vmatpush1.bf16.msra.mxu0 0
      %838 = vmatprep.subr.bf16.mxu0 0
      %839 = vmatpush1.bf16.msra.mxu0 0
      %840 = vmatprep.subr.bf16.mxu0 0
      %841 = vmatpush1.bf16.msra.mxu0 0
      %842 = vmatprep.mubr.bf16.mxu0 0
      %843 = vmatmul.mubr.bf16.gmra.mrb[0].mxu0 %v758
      %v844 = vpop.f32.mrb[0].mxu0
      %v845 = vadd.f32 0.0, %v844
      %v846 = vpop.f32.mrb[0].mxu0
      %v847 = vpop.f32.mrb[0].mxu0
      %v848 = vpop.f32.mrb[0].mxu0
      %849 = vdwg.mxu0
      %v850 = vadd.f32 %v721, %v804
      %v851 = vadd.f32 %v722, %v806
      %v852 = vadd.f32 %v723, %v845
      %s853 = scalar_lea.vmem %s1, 20
      %v854 = vld [vmem:[%s853] sm:$0xf]
      %v855 = vld [vmem:[%s219] sm:$0xff]
      %v857 = vcombine.high %v855, %v855
      %v859 = vunpack.c.l.s4 1983009808
      %v860 = vunpack.c.0.s8 %v859
      %v861 = vlaneseq
      %v862 = vshrl.u32 %v861, 7
      %v863 = vsub.s32 %v860, %v862
      %v864 = vrot.slane %v855, %v863
      %v866 = vunpack.c.l.s4 1983009808
      %v867 = vunpack.c.0.s8 %v866
      %v868 = vlaneseq
      %v869 = vshrl.u32 %v868, 7
      %v870 = vsub.s32 %v867, %v869
      %v871 = vrot.slane %v857, %v870
      %v872 = vcombine.high %v864, %v864
      %v873 = vcombine.high %v871, %v871
      %874 = vrot.lane.b32.xlu0 %v864, 108
      %v875 = vpop.permute.xlu0 %874
      %876 = vrot.lane.b32.xlu0 %v872, 108
      %v877 = vpop.permute.xlu0 %876
      %878 = vrot.lane.b32.xlu0 %v871, 108
      %v879 = vpop.permute.xlu0 %878
      %880 = vrot.lane.b32.xlu0 %v873, 108
      %v881 = vpop.permute.xlu0 %880
      %vm882 = vcmask 883712
      %v883 = vsel %vm882, %v875, %v877
      %v884 = vsel %vm882, %v877, %v879
      %v885 = vsel %vm882, %v879, %v881
      %v887 = vsel %vm261, %v854, 0
      %v890 = vsel %vm265, %v883, 0
      %v893 = vsel %vm265, %v884, 0
      %v896 = vsel %vm265, %v885, 0
      %898 = vmatprep.subr.bf16.mxu0 %v893
      %899 = vmatpush1.bf16.msra.mxu0 %v890
      %900 = vmatprep.subr.bf16.mxu0 0
      %901 = vmatpush1.bf16.msra.mxu0 0
      %902 = vmatprep.subr.bf16.mxu0 0
      %903 = vmatpush1.bf16.msra.mxu0 0
      %904 = vmatprep.subr.bf16.mxu0 0
      %905 = vmatpush1.bf16.msra.mxu0 0
      %906 = vmatprep.subr.bf16.mxu0 0
      %907 = vmatpush1.bf16.msra.mxu0 0
      %908 = vmatprep.subr.bf16.mxu0 0
      %909 = vmatpush1.bf16.msra.mxu0 0
      %910 = vmatprep.subr.bf16.mxu0 0
      %911 = vmatpush1.bf16.msra.mxu0 0
      %912 = vmatprep.subr.bf16.mxu0 0
      %913 = vmatpush1.bf16.msra.mxu0 0
      %914 = vmatprep.subr.bf16.mxu0 0
      %915 = vmatpush1.bf16.msra.mxu0 0
      %916 = vmatprep.subr.bf16.mxu0 0
      %917 = vmatpush1.bf16.msra.mxu0 0
      %918 = vmatprep.subr.bf16.mxu0 0
      %919 = vmatpush1.bf16.msra.mxu0 0
      %920 = vmatprep.subr.bf16.mxu0 0
      %921 = vmatpush1.bf16.msra.mxu0 0
      %922 = vmatprep.subr.bf16.mxu0 0
      %923 = vmatpush1.bf16.msra.mxu0 0
      %924 = vmatprep.subr.bf16.mxu0 0
      %925 = vmatpush1.bf16.msra.mxu0 0
      %926 = vmatprep.subr.bf16.mxu0 0
      %927 = vmatpush1.bf16.msra.mxu0 0
      %928 = vmatprep.subr.bf16.mxu0 0
      %929 = vmatpush1.bf16.msra.mxu0 0
      %930 = vmatprep.mubr.bf16.mxu0 0
      %931 = vmatmul.mubr.bf16.gmra.mrb[0].mxu0 %v887
      %v932 = vpop.f32.mrb[0].mxu0
      %v933 = vadd.f32 0.0, %v932
      %v934 = vpop.f32.mrb[0].mxu0
      %v935 = vadd.f32 0.0, %v934
      %v936 = vpop.f32.mrb[0].mxu0
      %v937 = vpop.f32.mrb[0].mxu0
      %938 = vdwg.mxu0
      %939 = vmatprep.subr.bf16.mxu0 0
      %940 = vmatpush1.bf16.msra.mxu0 %v896
      %941 = vmatprep.subr.bf16.mxu0 0
      %942 = vmatpush1.bf16.msra.mxu0 0
      %943 = vmatprep.subr.bf16.mxu0 0
      %944 = vmatpush1.bf16.msra.mxu0 0
      %945 = vmatprep.subr.bf16.mxu0 0
      %946 = vmatpush1.bf16.msra.mxu0 0
      %947 = vmatprep.subr.bf16.mxu0 0
      %948 = vmatpush1.bf16.msra.mxu0 0
      %949 = vmatprep.subr.bf16.mxu0 0
      %950 = vmatpush1.bf16.msra.mxu0 0
      %951 = vmatprep.subr.bf16.mxu0 0
      %952 = vmatpush1.bf16.msra.mxu0 0
      %953 = vmatprep.subr.bf16.mxu0 0
      %954 = vmatpush1.bf16.msra.mxu0 0
      %955 = vmatprep.subr.bf16.mxu0 0
      %956 = vmatpush1.bf16.msra.mxu0 0
      %957 = vmatprep.subr.bf16.mxu0 0
      %958 = vmatpush1.bf16.msra.mxu0 0
      %959 = vmatprep.subr.bf16.mxu0 0
      %960 = vmatpush1.bf16.msra.mxu0 0
      %961 = vmatprep.subr.bf16.mxu0 0
      %962 = vmatpush1.bf16.msra.mxu0 0
      %963 = vmatprep.subr.bf16.mxu0 0
      %964 = vmatpush1.bf16.msra.mxu0 0
      %965 = vmatprep.subr.bf16.mxu0 0
      %966 = vmatpush1.bf16.msra.mxu0 0
      %967 = vmatprep.subr.bf16.mxu0 0
      %968 = vmatpush1.bf16.msra.mxu0 0
      %969 = vmatprep.subr.bf16.mxu0 0
      %970 = vmatpush1.bf16.msra.mxu0 0
      %971 = vmatprep.mubr.bf16.mxu0 0
      %972 = vmatmul.mubr.bf16.gmra.mrb[0].mxu0 %v887
      %v973 = vpop.f32.mrb[0].mxu0
      %v974 = vadd.f32 0.0, %v973
      %v975 = vpop.f32.mrb[0].mxu0
      %v976 = vpop.f32.mrb[0].mxu0
      %v977 = vpop.f32.mrb[0].mxu0
      %978 = vdwg.mxu0
      %v979 = vadd.f32 %v850, %v933
      %v980 = vadd.f32 %v851, %v935
      %v981 = vadd.f32 %v852, %v974
      %s982 = scalar_lea.vmem %s1, 24
      %v983 = vld [vmem:[%s982] sm:$0xf]
      %v984 = vld [vmem:[%s219] sm:$0xff]
      %v986 = vcombine.high %v984, %v984
      %v988 = vunpack.c.l.s4 1983009808
      %v989 = vunpack.c.0.s8 %v988
      %v990 = vlaneseq
      %v991 = vshrl.u32 %v990, 7
      %v992 = vsub.s32 %v989, %v991
      %v993 = vrot.slane %v984, %v992
      %v995 = vunpack.c.l.s4 1983009808
      %v996 = vunpack.c.0.s8 %v995
      %v997 = vlaneseq
      %v998 = vshrl.u32 %v997, 7
      %v999 = vsub.s32 %v996, %v998
      %v1000 = vrot.slane %v986, %v999
      %v1001 = vcombine.high %v993, %v993
      %v1002 = vcombine.high %v1000, %v1000
      %1003 = vrot.lane.b32.xlu0 %v993, 92
      %v1004 = vpop.permute.xlu0 %1003
      %1005 = vrot.lane.b32.xlu0 %v1001, 92
      %v1006 = vpop.permute.xlu0 %1005
      %1007 = vrot.lane.b32.xlu0 %v1000, 92
      %v1008 = vpop.permute.xlu0 %1007
      %1009 = vrot.lane.b32.xlu0 %v1002, 92
      %v1010 = vpop.permute.xlu0 %1009
      %vm1011 = vcmask 752640
      %v1012 = vsel %vm1011, %v1004, %v1006
      %v1013 = vsel %vm1011, %v1006, %v1008
      %v1014 = vsel %vm1011, %v1008, %v1010
      %v1016 = vsel %vm261, %v983, 0
      %v1019 = vsel %vm265, %v1012, 0
      %v1022 = vsel %vm265, %v1013, 0
      %v1025 = vsel %vm265, %v1014, 0
      %1027 = vmatprep.subr.bf16.mxu0 %v1022
      %1028 = vmatpush1.bf16.msra.mxu0 %v1019
      %1029 = vmatprep.subr.bf16.mxu0 0
      %1030 = vmatpush1.bf16.msra.mxu0 0
      %1031 = vmatprep.subr.bf16.mxu0 0
      %1032 = vmatpush1.bf16.msra.mxu0 0
      %1033 = vmatprep.subr.bf16.mxu0 0
      %1034 = vmatpush1.bf16.msra.mxu0 0
      %1035 = vmatprep.subr.bf16.mxu0 0
      %1036 = vmatpush1.bf16.msra.mxu0 0
      %1037 = vmatprep.subr.bf16.mxu0 0
      %1038 = vmatpush1.bf16.msra.mxu0 0
      %1039 = vmatprep.subr.bf16.mxu0 0
      %1040 = vmatpush1.bf16.msra.mxu0 0
      %1041 = vmatprep.subr.bf16.mxu0 0
      %1042 = vmatpush1.bf16.msra.mxu0 0
      %1043 = vmatprep.subr.bf16.mxu0 0
      %1044 = vmatpush1.bf16.msra.mxu0 0
      %1045 = vmatprep.subr.bf16.mxu0 0
      %1046 = vmatpush1.bf16.msra.mxu0 0
      %1047 = vmatprep.subr.bf16.mxu0 0
      %1048 = vmatpush1.bf16.msra.mxu0 0
      %1049 = vmatprep.subr.bf16.mxu0 0
      %1050 = vmatpush1.bf16.msra.mxu0 0
      %1051 = vmatprep.subr.bf16.mxu0 0
      %1052 = vmatpush1.bf16.msra.mxu0 0
      %1053 = vmatprep.subr.bf16.mxu0 0
      %1054 = vmatpush1.bf16.msra.mxu0 0
      %1055 = vmatprep.subr.bf16.mxu0 0
      %1056 = vmatpush1.bf16.msra.mxu0 0
      %1057 = vmatprep.subr.bf16.mxu0 0
      %1058 = vmatpush1.bf16.msra.mxu0 0
      %1059 = vmatprep.mubr.bf16.mxu0 0
      %1060 = vmatmul.mubr.bf16.gmra.mrb[0].mxu0 %v1016
      %v1061 = vpop.f32.mrb[0].mxu0
      %v1062 = vadd.f32 0.0, %v1061
      %v1063 = vpop.f32.mrb[0].mxu0
      %v1064 = vadd.f32 0.0, %v1063
      %v1065 = vpop.f32.mrb[0].mxu0
      %v1066 = vpop.f32.mrb[0].mxu0
      %1067 = vdwg.mxu0
      %1068 = vmatprep.subr.bf16.mxu0 0
      %1069 = vmatpush1.bf16.msra.mxu0 %v1025
      %1070 = vmatprep.subr.bf16.mxu0 0
      %1071 = vmatpush1.bf16.msra.mxu0 0
      %1072 = vmatprep.subr.bf16.mxu0 0
      %1073 = vmatpush1.bf16.msra.mxu0 0
      %1074 = vmatprep.subr.bf16.mxu0 0
      %1075 = vmatpush1.bf16.msra.mxu0 0
      %1076 = vmatprep.subr.bf16.mxu0 0
      %1077 = vmatpush1.bf16.msra.mxu0 0
      %1078 = vmatprep.subr.bf16.mxu0 0
      %1079 = vmatpush1.bf16.msra.mxu0 0
      %1080 = vmatprep.subr.bf16.mxu0 0
      %1081 = vmatpush1.bf16.msra.mxu0 0
      %1082 = vmatprep.subr.bf16.mxu0 0
      %1083 = vmatpush1.bf16.msra.mxu0 0
      %1084 = vmatprep.subr.bf16.mxu0 0
      %1085 = vmatpush1.bf16.msra.mxu0 0
      %1086 = vmatprep.subr.bf16.mxu0 0
      %1087 = vmatpush1.bf16.msra.mxu0 0
      %1088 = vmatprep.subr.bf16.mxu0 0
      %1089 = vmatpush1.bf16.msra.mxu0 0
      %1090 = vmatprep.subr.bf16.mxu0 0
      %1091 = vmatpush1.bf16.msra.mxu0 0
      %1092 = vmatprep.subr.bf16.mxu0 0
      %1093 = vmatpush1.bf16.msra.mxu0 0
      %1094 = vmatprep.subr.bf16.mxu0 0
      %1095 = vmatpush1.bf16.msra.mxu0 0
      %1096 = vmatprep.subr.bf16.mxu0 0
      %1097 = vmatpush1.bf16.msra.mxu0 0
      %1098 = vmatprep.subr.bf16.mxu0 0
      %1099 = vmatpush1.bf16.msra.mxu0 0
      %1100 = vmatprep.mubr.bf16.mxu0 0
      %1101 = vmatmul.mubr.bf16.gmra.mrb[0].mxu0 %v1016
      %v1102 = vpop.f32.mrb[0].mxu0
      %v1103 = vadd.f32 0.0, %v1102
      %v1104 = vpop.f32.mrb[0].mxu0
      %v1105 = vpop.f32.mrb[0].mxu0
      %v1106 = vpop.f32.mrb[0].mxu0
      %1107 = vdwg.mxu0
      %v1108 = vadd.f32 %v979, %v1062
      %v1109 = vadd.f32 %v980, %v1064
      %v1110 = vadd.f32 %v981, %v1103
      %s1111 = scalar_lea.vmem %s1, 28
      %v1112 = vld [vmem:[%s1111] sm:$0xf]
      %v1113 = vld [vmem:[%s219] sm:$0xff]
      %v1115 = vcombine.high %v1113, %v1113
      %v1117 = vunpack.c.l.s4 1983009808
      %v1118 = vunpack.c.0.s8 %v1117
      %v1119 = vlaneseq
      %v1120 = vshrl.u32 %v1119, 7
      %v1121 = vsub.s32 %v1118, %v1120
      %v1122 = vrot.slane %v1113, %v1121
      %v1124 = vunpack.c.l.s4 1983009808
      %v1125 = vunpack.c.0.s8 %v1124
      %v1126 = vlaneseq
      %v1127 = vshrl.u32 %v1126, 7
      %v1128 = vsub.s32 %v1125, %v1127
      %v1129 = vrot.slane %v1115, %v1128
      %v1130 = vcombine.high %v1122, %v1122
      %v1131 = vcombine.high %v1129, %v1129
      %1132 = vrot.lane.b32.xlu0 %v1122, 91
      %v1133 = vpop.permute.xlu0 %1132
      %1134 = vrot.lane.b32.xlu0 %v1130, 91
      %v1135 = vpop.permute.xlu0 %1134
      %1136 = vrot.lane.b32.xlu0 %v1129, 91
      %v1137 = vpop.permute.xlu0 %1136
      %1138 = vrot.lane.b32.xlu0 %v1131, 91
      %v1139 = vpop.permute.xlu0 %1138
      %vm1140 = vcmask 744448
      %v1141 = vsel %vm1140, %v1133, %v1135
      %v1142 = vsel %vm1140, %v1135, %v1137
      %v1143 = vsel %vm1140, %v1137, %v1139
      %v1145 = vsel %vm261, %v1112, 0
      %v1148 = vsel %vm265, %v1141, 0
      %v1151 = vsel %vm265, %v1142, 0
      %v1154 = vsel %vm265, %v1143, 0
      %1156 = vmatprep.subr.bf16.mxu0 %v1151
      %1157 = vmatpush1.bf16.msra.mxu0 %v1148
      %1158 = vmatprep.subr.bf16.mxu0 0
      %1159 = vmatpush1.bf16.msra.mxu0 0
      %1160 = vmatprep.subr.bf16.mxu0 0
      %1161 = vmatpush1.bf16.msra.mxu0 0
      %1162 = vmatprep.subr.bf16.mxu0 0
      %1163 = vmatpush1.bf16.msra.mxu0 0
      %1164 = vmatprep.subr.bf16.mxu0 0
      %1165 = vmatpush1.bf16.msra.mxu0 0
      %1166 = vmatprep.subr.bf16.mxu0 0
      %1167 = vmatpush1.bf16.msra.mxu0 0
      %1168 = vmatprep.subr.bf16.mxu0 0
      %1169 = vmatpush1.bf16.msra.mxu0 0
      %1170 = vmatprep.subr.bf16.mxu0 0
      %1171 = vmatpush1.bf16.msra.mxu0 0
      %1172 = vmatprep.subr.bf16.mxu0 0
      %1173 = vmatpush1.bf16.msra.mxu0 0
      %1174 = vmatprep.subr.bf16.mxu0 0
      %1175 = vmatpush1.bf16.msra.mxu0 0
      %1176 = vmatprep.subr.bf16.mxu0 0
      %1177 = vmatpush1.bf16.msra.mxu0 0
      %1178 = vmatprep.subr.bf16.mxu0 0
      %1179 = vmatpush1.bf16.msra.mxu0 0
      %1180 = vmatprep.subr.bf16.mxu0 0
      %1181 = vmatpush1.bf16.msra.mxu0 0
      %1182 = vmatprep.subr.bf16.mxu0 0
      %1183 = vmatpush1.bf16.msra.mxu0 0
      %1184 = vmatprep.subr.bf16.mxu0 0
      %1185 = vmatpush1.bf16.msra.mxu0 0
      %1186 = vmatprep.subr.bf16.mxu0 0
      %1187 = vmatpush1.bf16.msra.mxu0 0
      %1188 = vmatprep.mubr.bf16.mxu0 0
      %1189 = vmatmul.mubr.bf16.gmra.mrb[0].mxu0 %v1145
      %v1190 = vpop.f32.mrb[0].mxu0
      %v1191 = vadd.f32 0.0, %v1190
      %v1192 = vpop.f32.mrb[0].mxu0
      %v1193 = vadd.f32 0.0, %v1192
      %v1194 = vpop.f32.mrb[0].mxu0
      %v1195 = vpop.f32.mrb[0].mxu0
      %1196 = vdwg.mxu0
      %1197 = vmatprep.subr.bf16.mxu0 0
      %1198 = vmatpush1.bf16.msra.mxu0 %v1154
      %1199 = vmatprep.subr.bf16.mxu0 0
      %1200 = vmatpush1.bf16.msra.mxu0 0
      %1201 = vmatprep.subr.bf16.mxu0 0
      %1202 = vmatpush1.bf16.msra.mxu0 0
      %1203 = vmatprep.subr.bf16.mxu0 0
      %1204 = vmatpush1.bf16.msra.mxu0 0
      %1205 = vmatprep.subr.bf16.mxu0 0
      %1206 = vmatpush1.bf16.msra.mxu0 0
      %1207 = vmatprep.subr.bf16.mxu0 0
      %1208 = vmatpush1.bf16.msra.mxu0 0
      %1209 = vmatprep.subr.bf16.mxu0 0
      %1210 = vmatpush1.bf16.msra.mxu0 0
      %1211 = vmatprep.subr.bf16.mxu0 0
      %1212 = vmatpush1.bf16.msra.mxu0 0
      %1213 = vmatprep.subr.bf16.mxu0 0
      %1214 = vmatpush1.bf16.msra.mxu0 0
      %1215 = vmatprep.subr.bf16.mxu0 0
      %1216 = vmatpush1.bf16.msra.mxu0 0
      %1217 = vmatprep.subr.bf16.mxu0 0
      %1218 = vmatpush1.bf16.msra.mxu0 0
      %1219 = vmatprep.subr.bf16.mxu0 0
      %1220 = vmatpush1.bf16.msra.mxu0 0
      %1221 = vmatprep.subr.bf16.mxu0 0
      %1222 = vmatpush1.bf16.msra.mxu0 0
      %1223 = vmatprep.subr.bf16.mxu0 0
      %1224 = vmatpush1.bf16.msra.mxu0 0
      %1225 = vmatprep.subr.bf16.mxu0 0
      %1226 = vmatpush1.bf16.msra.mxu0 0
      %1227 = vmatprep.subr.bf16.mxu0 0
      %1228 = vmatpush1.bf16.msra.mxu0 0
      %1229 = vmatprep.mubr.bf16.mxu0 0
      %1230 = vmatmul.mubr.bf16.gmra.mrb[0].mxu0 %v1145
      %v1231 = vpop.f32.mrb[0].mxu0
      %v1232 = vadd.f32 0.0, %v1231
      %v1233 = vpop.f32.mrb[0].mxu0
      %v1234 = vpop.f32.mrb[0].mxu0
      %v1235 = vpop.f32.mrb[0].mxu0
      %1236 = vdwg.mxu0
      %v1237 = vadd.f32 %v1108, %v1191
      %v1238 = vadd.f32 %v1109, %v1193
      %v1239 = vadd.f32 %v1110, %v1232
      %s1240 = scalar_lea.vmem %s1, 32
      %v1241 = vld [vmem:[%s1240] sm:$0xf]
      %v1242 = vld [vmem:[%s219] sm:$0xff]
      %v1244 = vcombine.high %v1242, %v1242
      %v1246 = vunpack.c.l.s4 1983009808
      %v1247 = vunpack.c.0.s8 %v1246
      %v1248 = vlaneseq
      %v1249 = vshrl.u32 %v1248, 7
      %v1250 = vsub.s32 %v1247, %v1249
      %v1251 = vrot.slane %v1242, %v1250
      %v1253 = vunpack.c.l.s4 1983009808
      %v1254 = vunpack.c.0.s8 %v1253
      %v1255 = vlaneseq
      %v1256 = vshrl.u32 %v1255, 7
      %v1257 = vsub.s32 %v1254, %v1256
      %v1258 = vrot.slane %v1244, %v1257
      %v1259 = vcombine.high %v1251, %v1251
      %v1260 = vcombine.high %v1258, %v1258
      %1261 = vrot.lane.b32.xlu0 %v1251, 90
      %v1262 = vpop.permute.xlu0 %1261
      %1263 = vrot.lane.b32.xlu0 %v1259, 90
      %v1264 = vpop.permute.xlu0 %1263
      %1265 = vrot.lane.b32.xlu0 %v1258, 90
      %v1266 = vpop.permute.xlu0 %1265
      %1267 = vrot.lane.b32.xlu0 %v1260, 90
      %v1268 = vpop.permute.xlu0 %1267
      %vm1269 = vcmask 736256
      %v1270 = vsel %vm1269, %v1262, %v1264
      %v1271 = vsel %vm1269, %v1264, %v1266
      %v1272 = vsel %vm1269, %v1266, %v1268
      %v1274 = vsel %vm261, %v1241, 0
      %v1277 = vsel %vm265, %v1270, 0
      %v1280 = vsel %vm265, %v1271, 0
      %v1283 = vsel %vm265, %v1272, 0
      %1285 = vmatprep.subr.bf16.mxu0 %v1280
      %1286 = vmatpush1.bf16.msra.mxu0 %v1277
      %1287 = vmatprep.subr.bf16.mxu0 0
      %1288 = vmatpush1.bf16.msra.mxu0 0
      %1289 = vmatprep.subr.bf16.mxu0 0
      %1290 = vmatpush1.bf16.msra.mxu0 0
      %1291 = vmatprep.subr.bf16.mxu0 0
      %1292 = vmatpush1.bf16.msra.mxu0 0
      %1293 = vmatprep.subr.bf16.mxu0 0
      %1294 = vmatpush1.bf16.msra.mxu0 0
      %1295 = vmatprep.subr.bf16.mxu0 0
      %1296 = vmatpush1.bf16.msra.mxu0 0
      %1297 = vmatprep.subr.bf16.mxu0 0
      %1298 = vmatpush1.bf16.msra.mxu0 0
      %1299 = vmatprep.subr.bf16.mxu0 0
      %1300 = vmatpush1.bf16.msra.mxu0 0
      %1301 = vmatprep.subr.bf16.mxu0 0
      %1302 = vmatpush1.bf16.msra.mxu0 0
      %1303 = vmatprep.subr.bf16.mxu0 0
      %1304 = vmatpush1.bf16.msra.mxu0 0
      %1305 = vmatprep.subr.bf16.mxu0 0
      %1306 = vmatpush1.bf16.msra.mxu0 0
      %1307 = vmatprep.subr.bf16.mxu0 0
      %1308 = vmatpush1.bf16.msra.mxu0 0
      %1309 = vmatprep.subr.bf16.mxu0 0
      %1310 = vmatpush1.bf16.msra.mxu0 0
      %1311 = vmatprep.subr.bf16.mxu0 0
      %1312 = vmatpush1.bf16.msra.mxu0 0
      %1313 = vmatprep.subr.bf16.mxu0 0
      %1314 = vmatpush1.bf16.msra.mxu0 0
      %1315 = vmatprep.subr.bf16.mxu0 0
      %1316 = vmatpush1.bf16.msra.mxu0 0
      %1317 = vmatprep.mubr.bf16.mxu0 0
      %1318 = vmatmul.mubr.bf16.gmra.mrb[0].mxu0 %v1274
      %v1319 = vpop.f32.mrb[0].mxu0
      %v1320 = vadd.f32 0.0, %v1319
      %v1321 = vpop.f32.mrb[0].mxu0
      %v1322 = vadd.f32 0.0, %v1321
      %v1323 = vpop.f32.mrb[0].mxu0
      %v1324 = vpop.f32.mrb[0].mxu0
      %1325 = vdwg.mxu0
      %1326 = vmatprep.subr.bf16.mxu0 0
      %1327 = vmatpush1.bf16.msra.mxu0 %v1283
      %1328 = vmatprep.subr.bf16.mxu0 0
      %1329 = vmatpush1.bf16.msra.mxu0 0
      %1330 = vmatprep.subr.bf16.mxu0 0
      %1331 = vmatpush1.bf16.msra.mxu0 0
      %1332 = vmatprep.subr.bf16.mxu0 0
      %1333 = vmatpush1.bf16.msra.mxu0 0
      %1334 = vmatprep.subr.bf16.mxu0 0
      %1335 = vmatpush1.bf16.msra.mxu0 0
      %1336 = vmatprep.subr.bf16.mxu0 0
      %1337 = vmatpush1.bf16.msra.mxu0 0
      %1338 = vmatprep.subr.bf16.mxu0 0
      %1339 = vmatpush1.bf16.msra.mxu0 0
      %1340 = vmatprep.subr.bf16.mxu0 0
      %1341 = vmatpush1.bf16.msra.mxu0 0
      %1342 = vmatprep.subr.bf16.mxu0 0
      %1343 = vmatpush1.bf16.msra.mxu0 0
      %1344 = vmatprep.subr.bf16.mxu0 0
      %1345 = vmatpush1.bf16.msra.mxu0 0
      %1346 = vmatprep.subr.bf16.mxu0 0
      %1347 = vmatpush1.bf16.msra.mxu0 0
      %1348 = vmatprep.subr.bf16.mxu0 0
      %1349 = vmatpush1.bf16.msra.mxu0 0
      %1350 = vmatprep.subr.bf16.mxu0 0
      %1351 = vmatpush1.bf16.msra.mxu0 0
      %1352 = vmatprep.subr.bf16.mxu0 0
      %1353 = vmatpush1.bf16.msra.mxu0 0
      %1354 = vmatprep.subr.bf16.mxu0 0
      %1355 = vmatpush1.bf16.msra.mxu0 0
      %1356 = vmatprep.subr.bf16.mxu0 0
      %1357 = vmatpush1.bf16.msra.mxu0 0
      %1358 = vmatprep.mubr.bf16.mxu0 0
      %1359 = vmatmul.mubr.bf16.gmra.mrb[0].mxu0 %v1274
      %v1360 = vpop.f32.mrb[0].mxu0
      %v1361 = vadd.f32 0.0, %v1360
      %v1362 = vpop.f32.mrb[0].mxu0
      %v1363 = vpop.f32.mrb[0].mxu0
      %v1364 = vpop.f32.mrb[0].mxu0
      %1365 = vdwg.mxu0
      %v1366 = vadd.f32 %v1237, %v1320
      %v1367 = vadd.f32 %v1238, %v1322
      %v1368 = vadd.f32 %v1239, %v1361
      %v1369 = vld [vmem:[%s4] sm:$0x7]
      %v1371 = vlaneseq
      %v1372 = vshrl.u32 %v1371, 7
      %v1373 = vsub.s32 0, %v1372
      %v1374 = vrot.slane %v1369, %v1373
      %v1375 = vlaneseq
      %v1376 = vshrl.u32 %v1375, 7
      %v1377 = vsub.s32 1, %v1376
      %v1378 = vrot.slane %v1369, %v1377
      %v1379 = vlaneseq
      %v1380 = vshrl.u32 %v1379, 7
      %v1381 = vsub.s32 2, %v1380
      %v1382 = vrot.slane %v1369, %v1381
      %v1386 = vmul.f32 %v1366, %v1374
      %v1387 = vmul.f32 %v1367, %v1378
      %v1388 = vmul.f32 %v1368, %v1382
      %v1389 = vadd.f32 %v1386, %v1387
      %v1390 = vadd.f32 %v1389, %v1388
      %1391 = vadd.xlane.f32.xlu0 %v1390
      %v1392 = vpop.xlane.xlu0 %1391
      %v1393 = vmul.f32 %v1392, 0.00390625
      %v1394 = vsub.f32 %v1366, %v1393
      %v1395 = vsub.f32 %v1367, %v1393
      %v1396 = vsub.f32 %v1368, %v1393
      %v1397 = vmul.f32 %v1394, %v1374
      %v1398 = vmul.f32 %v1395, %v1378
      %v1399 = vmul.f32 %v1396, %v1382
      %v1400 = vmul.f32 %v1397, %v1397
      %v1401 = vmul.f32 %v1398, %v1398
      %v1402 = vmul.f32 %v1399, %v1399
      %v1403 = vadd.f32 %v1400, %v1401
      %v1404 = vadd.f32 %v1403, %v1402
      %1405 = vadd.xlane.f32.xlu0 %v1404
      %v1406 = vpop.xlane.xlu0 %1405
      %v1407 = vmul.f32 %v1406, 0.00390625
      %v1408 = vadd.f32 %v1407, 1e-05
      %v1409 = vrsqrt.pop %v1408
      %v1410 = vmul.f32 %v1397, %v1409
      %v1411 = vmul.f32 %v1398, %v1409
      %v1412 = vmul.f32 %v1399, %v1409
      %v1413 = vmul.f32 %v1410, 0.5
      %v1414 = vmul.f32 %v1411, 0.5
      %v1415 = vmul.f32 %v1412, 0.5
      %v1416 = vmul.f32 %v1410, 0.70710677
      %v1417 = vmul.f32 %v1411, 0.70710677
      %v1418 = vmul.f32 %v1412, 0.70710677
      %v1419 = verf.f32.pop %v1416
      %v1420 = verf.f32.pop %v1417
      %v1421 = verf.f32.pop %v1418
      %v1422 = vadd.f32 %v1419, 1.0
      %v1423 = vadd.f32 %v1420, 1.0
      %v1424 = vadd.f32 %v1421, 1.0
      %v1425 = vmul.f32 %v1413, %v1422
      %v1426 = vmul.f32 %v1414, %v1423
      %v1427 = vmul.f32 %v1415, %v1424
      %v1428 = vld [vmem:[%s2] sm:$0xf]
      %v1429 = vpack.c.bf16 %v1425, %v1425
      %v1430 = vpack.c.bf16 %v1426, %v1426
      %v1431 = vpack.c.bf16 %v1427, %v1427
      %v1432 = vld [vmem:[%s3] sm:$0xff]
      %1434 = vset.pattern.permute.xlu0 0
      %1435 = vperm.xlu0 %1434, %v1432
      %v1436 = vpop.permute.xlu0 %1435
      %vm1438 = vcmask 64512
      %v1440 = vsel %vm1438, %v1428, 0
      %vm1442 = vcmask 1043456
      %v1444 = vsel %vm1442, %v1429, 0
      %v1447 = vsel %vm1442, %v1430, 0
      %v1450 = vsel %vm1442, %v1431, 0
      %1452 = vmatprep.subr.bf16.mxu0 %v1447
      %1453 = vmatpush1.bf16.msra.mxu0 %v1444
      %1454 = vmatprep.subr.bf16.mxu0 0
      %1455 = vmatpush1.bf16.msra.mxu0 0
      %1456 = vmatprep.subr.bf16.mxu0 0
      %1457 = vmatpush1.bf16.msra.mxu0 0
      %1458 = vmatprep.subr.bf16.mxu0 0
      %1459 = vmatpush1.bf16.msra.mxu0 0
      %1460 = vmatprep.subr.bf16.mxu0 0
      %1461 = vmatpush1.bf16.msra.mxu0 0
      %1462 = vmatprep.subr.bf16.mxu0 0
      %1463 = vmatpush1.bf16.msra.mxu0 0
      %1464 = vmatprep.subr.bf16.mxu0 0
      %1465 = vmatpush1.bf16.msra.mxu0 0
      %1466 = vmatprep.subr.bf16.mxu0 0
      %1467 = vmatpush1.bf16.msra.mxu0 0
      %1468 = vmatprep.subr.bf16.mxu0 0
      %1469 = vmatpush1.bf16.msra.mxu0 0
      %1470 = vmatprep.subr.bf16.mxu0 0
      %1471 = vmatpush1.bf16.msra.mxu0 0
      %1472 = vmatprep.subr.bf16.mxu0 0
      %1473 = vmatpush1.bf16.msra.mxu0 0
      %1474 = vmatprep.subr.bf16.mxu0 0
      %1475 = vmatpush1.bf16.msra.mxu0 0
      %1476 = vmatprep.subr.bf16.mxu0 0
      %1477 = vmatpush1.bf16.msra.mxu0 0
      %1478 = vmatprep.subr.bf16.mxu0 0
      %1479 = vmatpush1.bf16.msra.mxu0 0
      %1480 = vmatprep.subr.bf16.mxu0 0
      %1481 = vmatpush1.bf16.msra.mxu0 0
      %1482 = vmatprep.subr.bf16.mxu0 0
      %1483 = vmatpush1.bf16.msra.mxu0 0
      %1484 = vmatprep.mubr.bf16.mxu0 0
      %1485 = vmatmul.mubr.bf16.gmra.mrb[0].mxu0 %v1440
      %v1486 = vpop.f32.mrb[0].mxu0
      %v1487 = vadd.f32 %v1436, %v1486
      %v1488 = vpop.f32.mrb[0].mxu0
      %v1489 = vadd.f32 %v1436, %v1488
      %v1490 = vpop.f32.mrb[0].mxu0
      %v1491 = vpop.f32.mrb[0].mxu0
      %1492 = vdwg.mxu0
      %1493 = vmatprep.subr.bf16.mxu0 0
      %1494 = vmatpush1.bf16.msra.mxu0 %v1450
      %1495 = vmatprep.subr.bf16.mxu0 0
      %1496 = vmatpush1.bf16.msra.mxu0 0
      %1497 = vmatprep.subr.bf16.mxu0 0
      %1498 = vmatpush1.bf16.msra.mxu0 0
      %1499 = vmatprep.subr.bf16.mxu0 0
      %1500 = vmatpush1.bf16.msra.mxu0 0
      %1501 = vmatprep.subr.bf16.mxu0 0
      %1502 = vmatpush1.bf16.msra.mxu0 0
      %1503 = vmatprep.subr.bf16.mxu0 0
      %1504 = vmatpush1.bf16.msra.mxu0 0
      %1505 = vmatprep.subr.bf16.mxu0 0
      %1506 = vmatpush1.bf16.msra.mxu0 0
      %1507 = vmatprep.subr.bf16.mxu0 0
      %1508 = vmatpush1.bf16.msra.mxu0 0
      %1509 = vmatprep.subr.bf16.mxu0 0
      %1510 = vmatpush1.bf16.msra.mxu0 0
      %1511 = vmatprep.subr.bf16.mxu0 0
      %1512 = vmatpush1.bf16.msra.mxu0 0
      %1513 = vmatprep.subr.bf16.mxu0 0
      %1514 = vmatpush1.bf16.msra.mxu0 0
      %1515 = vmatprep.subr.bf16.mxu0 0
      %1516 = vmatpush1.bf16.msra.mxu0 0
      %1517 = vmatprep.subr.bf16.mxu0 0
      %1518 = vmatpush1.bf16.msra.mxu0 0
      %1519 = vmatprep.subr.bf16.mxu0 0
      %1520 = vmatpush1.bf16.msra.mxu0 0
      %1521 = vmatprep.subr.bf16.mxu0 0
      %1522 = vmatpush1.bf16.msra.mxu0 0
      %1523 = vmatprep.subr.bf16.mxu0 0
      %1524 = vmatpush1.bf16.msra.mxu0 0
      %1525 = vmatprep.mubr.bf16.mxu0 0
      %1526 = vmatmul.mubr.bf16.gmra.mrb[0].mxu0 %v1440
      %v1527 = vpop.f32.mrb[0].mxu0
      %v1528 = vadd.f32 %v1436, %v1527
      %v1529 = vpop.f32.mrb[0].mxu0
      %v1530 = vpop.f32.mrb[0].mxu0
      %v1531 = vpop.f32.mrb[0].mxu0
      %1532 = vdwg.mxu0
      %1533 = vst [vmem:[%s224] sm:$0xff] %v1487
      %1534 = vst [vmem:[%s224 + $0x8] sm:$0xff] %v1489
      %1535 = vst [vmem:[%s224 + $0x10] sm:$0xff] %v1528
      %p1536 = scmp.lt.s32.totalorder %s16, 1
      %s1537 = scalar_select %p1536, %s16, 1
      %s1538 = smul.addr %s1537, 3
      %s1539 = smul.addr %s1538, 8
      %s1540 = scalar_lea.vmem %s5, %s1539
      // Predicated region
      $region41: #{conv_block_forward.1} parent=39 // pred_check
        %p1541 = pneg %p144
      $region42: #{conv_block_forward.1} parent=39 // pred_check_branch
        %1543 = sbr.rel (%p1541) target = $region44
      $region43: #{conv_block_forward.1} parent=39 // pred_region
        _
      $region44: #{conv_block_forward.1} parent=39 // pred_fallthru
        _
    $region40: #{conv_block_forward.1} parent=5 // pred_fallthru
      _
    %p1544 = scmp.le.s32.totalorder 2, %s11
    // Predicated region
    $region45: #{conv_block_forward.1} parent=5 // pred_check
      %p1545 = pneg %p1544
    $region46: #{conv_block_forward.1} parent=5 // pred_check_branch
      %1547 = sbr.rel (%p1545) target = $region48
    $region47: #{conv_block_forward.1} parent=5 // pred_region
      %s1548 = ssub.s32 %s11, 2
      // Predicated region
      $region49: #{conv_block_forward.1} parent=47 // pred_check
        %p1549 = pneg %p150
      $region50: #{conv_block_forward.1} parent=47 // pred_check_branch
        %1551 = sbr.rel (%p1549) target = $region52
      $region51: #{conv_block_forward.1} parent=47 // pred_region
        %p1552 = scmp.lt.s32.totalorder %s17, 1
        %s1553 = scalar_select %p1552, %s17, 1
        %s1554 = smul.addr %s1553, 3
        %s1555 = smul.addr %s1554, 8
        %s1556 = scalar_lea.vmem %s5, %s1555
      $region52: #{conv_block_forward.1} parent=47 // pred_fallthru
        _
    $region48: #{conv_block_forward.1} parent=5 // pred_fallthru
      _
  $region6: #{conv_block_forward.1} parent=0 // loop_footer
    %s15 = sadd.s32 1, %s11
  $region7: #{conv_block_forward.1} parent=0 // loop_footer_branch
    %10 = sbr.rel target = $region3
  $region8: #{conv_block_forward.1} parent=0 // loop_exit
    _

</llo_original>
